<compile_context>
chip_gen: v7x
topology: tpu7x:2x2x1
jax: 0.10.0
libtpu: 0.0.40
codegen_flags: <defaults>
</compile_context>

<pallas_src>
import functools

import jax
import jax.numpy as jnp
from jax.experimental import pallas as pl
from jax.experimental.pallas import tpu as pltpu


# --------------------------------------------------------------------------
# Config-like constants (stand-ins for ExperimentConfig fields)
# --------------------------------------------------------------------------
KL_LOSS_WEIGHT = 0.1       # cfg.manifold_cfg.kl_loss_weight
SHIFT_L2_WEIGHT = 0.01     # cfg.manifold_cfg.shift_l2_weight
ENABLE_SHIFT_L2 = True     # cfg.manifold_cfg.enable_shift_l2

# Explicit scoped-VMEM budget: < 64 MiB physical on v7x, > 16/32 MiB scoped
# defaults on v5e/v6e so the larger tiles below are actually usable.
VMEM_LIMIT_BYTES = 48 * 1024 * 1024


def _pick_tile(dim, cap, aligns, min_tiles=1):
    """Largest tile <= cap that divides `dim`, aligned to the first workable
    entry of `aligns` (tried in order); optionally capped so the axis yields
    >= min_tiles tiles (megacore).  Falls back to the full dimension (always
    a legal block)."""
    cap = min(cap, dim)
    if min_tiles > 1 and dim // min_tiles >= min(aligns):
        cap = min(cap, dim // min_tiles)
    for align in aligns:
        t = (cap // align) * align
        while t >= align:
            if dim % t == 0:
                return t
            t -= align
    return dim


# --------------------------------------------------------------------------
# Kernel 1: fused encoder + projection head for BOTH views
#   z_v = head(model(x_v)), v in {0, 1}
#   grid = (batch_tiles [parallel], k_tiles [arbitrary])
# Each view is streamed once in bf16; the encoder weight tile is DMA'd once
# per (bt, kt) step and reused for both views (MXU M effectively doubled).
# --------------------------------------------------------------------------
def _encode_head_kernel(x0_ref, x1_ref, we_ref, be_ref, w1_ref, b1_ref,
                        w2_ref, b2_ref, z0_ref, z1_ref, acc0, acc1):
    # Contraction axis (grid axis 1) MUST stay innermost for the accumulators
    # and the pl.when init/finalize gating below to be correct.
    kt = pl.program_id(1)

    @pl.when(kt == 0)
    def _():
        acc0[...] = jnp.zeros_like(acc0)
        acc1[...] = jnp.zeros_like(acc1)

    # Encoder partial contraction: bf16 operands, f32 MXU accumulation.
    acc0[...] += jnp.dot(x0_ref[...], we_ref[...],
                         preferred_element_type=jnp.float32)
    acc1[...] += jnp.dot(x1_ref[...], we_ref[...],
                         preferred_element_type=jnp.float32)

    @pl.when(kt == pl.num_programs(1) - 1)
    def _():
        # Head: linear -> relu -> linear with bf16 operands (native MXU rate),
        # f32 accumulation.  128-wide feature dims are MXU-native on v5e and
        # half-width on v6e/v7x; use 256-multiples there if dims are free.
        def head(acc, z_ref):
            feat = (acc[...] + be_ref[...]).astype(jnp.bfloat16)
            h = jnp.maximum(
                jnp.dot(feat, w1_ref[...],
                        preferred_element_type=jnp.float32) + b1_ref[...],
                0.0).astype(jnp.bfloat16)
            z_ref[...] = (jnp.dot(h, w2_ref[...],
                                  preferred_element_type=jnp.float32)
                          + b2_ref[...]).astype(z_ref.dtype)

        head(acc0, z0_ref)
        head(acc1, z1_ref)


def encode_and_head(x0_flat, x1_flat, params, *,
                    row_tile_cap=512, k_tile_cap=2048):
    """x0_flat, x1_flat: [B, in_dim] bf16.  Returns (z0, z1), each [B, emb] f32."""
    we, be, w1, b1, w2, b2 = params
    B, in_dim = x0_flat.shape
    out_size = we.shape[1]
    hidden = w1.shape[1]
    emb = w2.shape[1]

    # Pad the contraction axis to a 128 multiple (zeros contribute nothing)
    # so K can always be tiled lane-aligned instead of one giant K block.
    pad_k = (-in_dim) % 128
    if pad_k:
        x0_flat = jnp.pad(x0_flat, ((0, 0), (0, pad_k)))
        x1_flat = jnp.pad(x1_flat, ((0, 0), (0, pad_k)))
        we = jnp.pad(we, ((0, pad_k), (0, 0)))
        in_dim += pad_k

    # Batch tile: prefer 128-aligned, keep >= 2 tiles when possible so the
    # "parallel" axis can feed both v7x TensorCores.
    bm = _pick_tile(B, row_tile_cap, (128, 16, 8), min_tiles=2)
    tk = _pick_tile(in_dim, k_tile_cap, (128,))
    grid = (B // bm, in_dim // tk)

    out_shape = (jax.ShapeDtypeStruct((B, emb), jnp.float32),
                 jax.ShapeDtypeStruct((B, emb), jnp.float32))

    return pl.pallas_call(
        _encode_head_kernel,
        out_shape=out_shape,
        grid_spec=pltpu.PrefetchScalarGridSpec(
            num_scalar_prefetch=0,
            grid=grid,
            in_specs=[
                pl.BlockSpec((bm, tk), lambda bt, kt: (bt, kt)),          # x0
                pl.BlockSpec((bm, tk), lambda bt, kt: (bt, kt)),          # x1
                pl.BlockSpec((tk, out_size), lambda bt, kt: (kt, 0)),     # we
                pl.BlockSpec((1, out_size), lambda bt, kt: (0, 0)),       # be
                pl.BlockSpec((out_size, hidden), lambda bt, kt: (0, 0)),  # w1
                pl.BlockSpec((1, hidden), lambda bt, kt: (0, 0)),         # b1
                pl.BlockSpec((hidden, emb), lambda bt, kt: (0, 0)),       # w2
                pl.BlockSpec((1, emb), lambda bt, kt: (0, 0)),            # b2
            ],
            out_specs=[pl.BlockSpec((bm, emb), lambda bt, kt: (bt, 0)),   # z0
                       pl.BlockSpec((bm, emb), lambda bt, kt: (bt, 0))],  # z1
            scratch_shapes=[pltpu.VMEM((bm, out_size), jnp.float32),
                            pltpu.VMEM((bm, out_size), jnp.float32)],
        ),
        compiler_params=pltpu.CompilerParams(
            dimension_semantics=("parallel", "arbitrary"),
            vmem_limit_bytes=VMEM_LIMIT_BYTES),
    )(x0_flat, x1_flat, we, be, w1, b1, w2, b2)


# --------------------------------------------------------------------------
# Kernel 2: fused manifold operator + manifold loss (tiled over batch)
#   c      = tanh(z0 @ Wc)            (coefficients)
#   shift  = z0 @ Ws
#   z1_hat = z0 @ T + shift           (transport-operator application)
#   kl     = 0.5 * mean(c**2)
#   loss   = mse(z1_hat, z1) + kl_w*kl [+ shift_w * mean(sum(shift**2,-1))]
# Partial sums accumulate in (1,1) VMEM scratches; VMEM use is O(tile), not
# O(batch); T/Wc/Ws stay resident (constant index map) across the grid.
# --------------------------------------------------------------------------
def _manifold_kernel(z0_ref, z1_ref, t_ref, wc_ref, ws_ref, loss_ref,
                     sse_ref, ssc_ref, sss_ref, *,
                     rows, emb, coeff_dim, kl_w, shift_w, use_shift_l2):
    i = pl.program_id(0)

    @pl.when(i == 0)
    def _():
        sse_ref[...] = jnp.zeros_like(sse_ref)
        ssc_ref[...] = jnp.zeros_like(ssc_ref)
        sss_ref[...] = jnp.zeros_like(sss_ref)

    z0 = z0_ref[...]
    z1 = z1_ref[...]
    c = jnp.tanh(jnp.dot(z0, wc_ref[...], preferred_element_type=jnp.float32))
    shift = jnp.dot(z0, ws_ref[...], preferred_element_type=jnp.float32)
    z1_hat = jnp.dot(z0, t_ref[...],
                     preferred_element_type=jnp.float32) + shift
    diff = z1_hat - z1

    sse_ref[...] += jnp.sum(diff * diff, keepdims=True)
    ssc_ref[...] += jnp.sum(c * c, keepdims=True)
    if use_shift_l2:
        sss_ref[...] += jnp.sum(shift * shift, keepdims=True)

    @pl.when(i == pl.num_programs(0) - 1)
    def _():
        transop_loss = sse_ref[...] / (rows * emb)        # F.mse_loss (mean)
        kl_loss = 0.5 * ssc_ref[...] / (rows * coeff_dim)
        loss = transop_loss + kl_w * kl_loss
        if use_shift_l2:
            loss = loss + shift_w * (sss_ref[...] / rows)
        loss_ref[...] = loss


def manifold_loss_fused(z0, z1, T, Wc, Ws, *, row_tile_cap=512):
    B, emb = z0.shape
    coeff_dim = Wc.shape[1]
    bt = _pick_tile(B, row_tile_cap, (128, 16, 8))
    grid = (B // bt,)

    kernel = functools.partial(_manifold_kernel,
                               rows=B, emb=emb, coeff_dim=coeff_dim,
                               kl_w=KL_LOSS_WEIGHT,
                               shift_w=SHIFT_L2_WEIGHT,
                               use_shift_l2=ENABLE_SHIFT_L2)
    out = pl.pallas_call(
        kernel,
        out_shape=jax.ShapeDtypeStruct((1, 1), jnp.float32),
        grid_spec=pltpu.PrefetchScalarGridSpec(
            num_scalar_prefetch=0,
            grid=grid,
            in_specs=[
                pl.BlockSpec((bt, emb), lambda i: (i, 0)),   # z0 tile
                pl.BlockSpec((bt, emb), lambda i: (i, 0)),   # z1 tile
                pl.BlockSpec(T.shape, lambda i: (0, 0)),     # T (resident)
                pl.BlockSpec(Wc.shape, lambda i: (0, 0)),    # Wc (resident)
                pl.BlockSpec(Ws.shape, lambda i: (0, 0)),    # Ws (resident)
            ],
            out_specs=pl.BlockSpec((1, 1), lambda i: (0, 0)),
            scratch_shapes=[pltpu.VMEM((1, 1), jnp.float32),
                            pltpu.VMEM((1, 1), jnp.float32),
                            pltpu.VMEM((1, 1), jnp.float32)],
        ),
        compiler_params=pltpu.CompilerParams(
            dimension_semantics=("arbitrary",),
            vmem_limit_bytes=VMEM_LIMIT_BYTES),
    )(z0, z1, T, Wc, Ws)
    return out[0, 0]


# --------------------------------------------------------------------------
# BaseMethod in JAX (glue), Pallas kernels on the hot paths
# --------------------------------------------------------------------------
class BaseMethodPallas:
    def __init__(self, key, in_dim, out_size=128, head_hidden=128,
                 emb_size=128, coeff_dim=128):
        self.out_size = out_size
        self.emb_size = emb_size
        ks = jax.random.split(key, 8)
        s = lambda k, shp, scale: (jax.random.normal(k, shp, jnp.float32)
                                   * scale)
        # encoder (synthetic stand-in for get_model): flatten -> linear.
        # Weights that feed the MXU are stored bf16 (native rate, half DMA).
        we = s(ks[0], (in_dim, out_size),
               1.0 / jnp.sqrt(in_dim)).astype(jnp.bfloat16)
        be = jnp.zeros((1, out_size), jnp.float32)
        # head (get_head): linear -> relu -> linear
        w1 = s(ks[1], (out_size, head_hidden),
               1.0 / jnp.sqrt(out_size)).astype(jnp.bfloat16)
        b1 = jnp.zeros((1, head_hidden), jnp.float32)
        w2 = s(ks[2], (head_hidden, emb_size),
               1.0 / jnp.sqrt(head_hidden)).astype(jnp.bfloat16)
        b2 = jnp.zeros((1, emb_size), jnp.float32)
        self.enc_head_params = (we, be, w1, b1, w2, b2)
        # synthetic manifold operator parameters (stand-in for the external
        # manifold_operator argument): T [E,E], coeff map Wc, shift map Ws
        self.T = (jnp.eye(emb_size, dtype=jnp.float32)
                  + s(ks[3], (emb_size, emb_size), 0.05))
        self.Wc = s(ks[4], (emb_size, coeff_dim), 0.1)
        self.Ws = s(ks[5], (emb_size, emb_size), 0.05)

    def manifold_augmentation(self, z0, z1):
        """BaseMethod.manifold_augmentation with the synthetic operator; the
        operator math + transop + loss are fused into one Pallas kernel."""
        loss = manifold_loss_fused(z0, z1, self.T, self.Wc, self.Ws)
        # synthetic operator leaves the embeddings untouched (z*_tilde = z*)
        return z0, z1, loss

    def forward(self, samples):
        x0, x1 = samples                       # NCHW views
        B = x0.shape[0]
        x0f = x0.reshape(B, -1)
        x1f = x1.reshape(B, -1)
        # Data pipeline should deliver bf16 views so the encoder kernel
        # streams them directly (no extra read-f32/write-bf16 HBM pass).
        if x0f.dtype != jnp.bfloat16:
            x0f = x0f.astype(jnp.bfloat16)
            x1f = x1f.astype(jnp.bfloat16)
        z0, z1 = encode_and_head(x0f, x1f, self.enc_head_params)  # Pallas
        return self.manifold_augmentation(z0, z1)                 # Pallas


# --------------------------------------------------------------------------
# Reference (plain JAX, identical dtype handling) for a numerical check
# --------------------------------------------------------------------------
def _reference(method, samples):
    x0, x1 = samples
    B = x0.shape[0]
    we, be, w1, b1, w2, b2 = method.enc_head_params

    def enc(xf):
        f = jnp.dot(xf.astype(jnp.bfloat16), we,
                    preferred_element_type=jnp.float32) + be
        fb = f.astype(jnp.bfloat16)
        h = jnp.maximum(jnp.dot(fb, w1,
                                preferred_element_type=jnp.float32) + b1,
                        0.0).astype(jnp.bfloat16)
        return jnp.dot(h, w2, preferred_element_type=jnp.float32) + b2

    z0 = enc(x0.reshape(B, -1))
    z1 = enc(x1.reshape(B, -1))
    c = jnp.tanh(jnp.dot(z0, method.Wc, preferred_element_type=jnp.float32))
    shift = jnp.dot(z0, method.Ws, preferred_element_type=jnp.float32)
    z1_hat = jnp.dot(z0, method.T,
                     preferred_element_type=jnp.float32) + shift
    kl = 0.5 * jnp.mean(c * c)
    loss = jnp.mean((z1_hat - z1) ** 2) + KL_LOSS_WEIGHT * kl
    if ENABLE_SHIFT_L2:
        loss = loss + SHIFT_L2_WEIGHT * jnp.mean(jnp.sum(shift ** 2, axis=-1))
    return z0, z1, loss


if __name__ == "__main__":
    key = jax.random.PRNGKey(0)
    k_param, k_x0, k_x1 = jax.random.split(key, 3)

    B, C, H, W = 8, 4, 16, 16
    in_dim = C * H * W                      # 1024, lane-aligned
    method = BaseMethodPallas(k_param, in_dim, out_size=128,
                              head_hidden=128, emb_size=128, coeff_dim=128)

    # Data pipeline supplies bf16 views (avoids a separate cast pass).
    x0 = jax.random.normal(k_x0, (B, C, H, W), jnp.float32).astype(jnp.bfloat16)
    x1 = jax.random.normal(k_x1, (B, C, H, W), jnp.float32).astype(jnp.bfloat16)

    fwd = jax.jit(lambda a, b: method.forward((a, b)))
    z0_t, z1_t, loss = fwd(x0, x1)
    jax.block_until_ready((z0_t, z1_t, loss))

    # numerical sanity check against plain-JAX reference (identical bf16
    # operand handling; f32 accumulation everywhere)
    z0_r, z1_r, ref_loss = _reference(method, (x0, x1))
    assert jnp.allclose(z0_t, z0_r, rtol=5e-3, atol=5e-3), "z0 mismatch"
    assert jnp.allclose(z1_t, z1_r, rtol=5e-3, atol=5e-3), "z1 mismatch"
    assert jnp.allclose(loss, ref_loss, rtol=5e-3, atol=1e-4), (loss, ref_loss)

    print("KERNEL_OK")
</pallas_src>

<mosaic_0001>
module attributes {stable_mosaic.version = 11 : i64} {
  func.func @_encode_head_kernel(%arg0: i32, %arg1: i32, %arg2: memref<8x1024xbf16, #tpu.memory_space<vmem>>, %arg3: memref<8x1024xbf16, #tpu.memory_space<vmem>>, %arg4: memref<1024x128xbf16, #tpu.memory_space<vmem>>, %arg5: memref<1x128xf32, #tpu.memory_space<vmem>>, %arg6: memref<128x128xbf16, #tpu.memory_space<vmem>>, %arg7: memref<1x128xf32, #tpu.memory_space<vmem>>, %arg8: memref<128x128xbf16, #tpu.memory_space<vmem>>, %arg9: memref<1x128xf32, #tpu.memory_space<vmem>>, %arg10: memref<8x128xf32, #tpu.memory_space<vmem>>, %arg11: memref<8x128xf32, #tpu.memory_space<vmem>>, %arg12: memref<8x128xf32, #tpu.memory_space<vmem>>, %arg13: memref<8x128xf32, #tpu.memory_space<vmem>>) attributes {dimension_semantics = [#tpu.dimension_semantics<parallel>, #tpu.dimension_semantics<arbitrary>], iteration_bounds = array<i64: 1, 1>, scalar_prefetch = 0 : i64, scratch_operands = 2 : i64, tpu.core_type = #tpu.core_type<tc>, window_params = [{transform_indices = @transform_0, window_bounds = array<i64: 8, 1024>}, {transform_indices = @transform_1, window_bounds = array<i64: 8, 1024>}, {transform_indices = @transform_2, window_bounds = array<i64: 1024, 128>}, {pipeline_mode = #tpu.pipeline_mode<synchronous>, transform_indices = @transform_3, window_bounds = array<i64: 1, 128>}, {pipeline_mode = #tpu.pipeline_mode<synchronous>, transform_indices = @transform_4, window_bounds = array<i64: 128, 128>}, {pipeline_mode = #tpu.pipeline_mode<synchronous>, transform_indices = @transform_5, window_bounds = array<i64: 1, 128>}, {pipeline_mode = #tpu.pipeline_mode<synchronous>, transform_indices = @transform_6, window_bounds = array<i64: 128, 128>}, {pipeline_mode = #tpu.pipeline_mode<synchronous>, transform_indices = @transform_7, window_bounds = array<i64: 1, 128>}, {transform_indices = @transform_8, window_bounds = array<i64: 8, 128>}, {transform_indices = @transform_9, window_bounds = array<i64: 8, 128>}]} {
    %c0_i32 = arith.constant 0 : i32
    %0 = arith.cmpi eq, %arg1, %c0_i32 : i32
    %1 = arith.extui %0 : i1 to i32
    %c0_i32_0 = arith.constant 0 : i32
    %2 = arith.cmpi ne, %1, %c0_i32_0 : i32
    scf.if %2 {
      %cst_19 = arith.constant 0.000000e+00 : f32
      %18 = vector.broadcast %cst_19 : f32 to vector<8x128xf32>
      %c0_20 = arith.constant 0 : index
      %c0_21 = arith.constant 0 : index
      %19 = vector.load %arg12[%c0_20, %c0_21] : memref<8x128xf32, #tpu.memory_space<vmem>>, vector<8x128xf32>
      tpu.vector_store %arg12[%c0_20, %c0_21], %18 {strides = array<i32>} : memref<8x128xf32, #tpu.memory_space<vmem>>, vector<8x128xf32>,
      %cst_22 = arith.constant 0.000000e+00 : f32
      %20 = vector.broadcast %cst_22 : f32 to vector<8x128xf32>
      %c0_23 = arith.constant 0 : index
      %c0_24 = arith.constant 0 : index
      %21 = vector.load %arg13[%c0_23, %c0_24] : memref<8x128xf32, #tpu.memory_space<vmem>>, vector<8x128xf32>
      tpu.vector_store %arg13[%c0_23, %c0_24], %20 {strides = array<i32>} : memref<8x128xf32, #tpu.memory_space<vmem>>, vector<8x128xf32>,
    } else {
    }
    %c0 = arith.constant 0 : index
    %c0_1 = arith.constant 0 : index
    %3 = vector.load %arg12[%c0, %c0_1] : memref<8x128xf32, #tpu.memory_space<vmem>>, vector<8x128xf32>
    %c0_2 = arith.constant 0 : index
    %c0_3 = arith.constant 0 : index
    %4 = vector.load %arg2[%c0_2, %c0_3] : memref<8x1024xbf16, #tpu.memory_space<vmem>>, vector<8x1024xbf16>
    %c0_4 = arith.constant 0 : index
    %c0_5 = arith.constant 0 : index
    %5 = vector.load %arg4[%c0_4, %c0_5] : memref<1024x128xbf16, #tpu.memory_space<vmem>>, vector<1024x128xbf16>
    %cst = arith.constant dense<0.000000e+00> : vector<8x128xf32>
    %6 = tpu.matmul %4, %5, %cst {dimension_numbers = #tpu.dot_dimension_numbers<[1], [0], [0], [1], [0, 0, 1, 1], [], []>} : vector<8x1024xbf16>, vector<1024x128xbf16>, vector<8x128xf32> -> vector<8x128xf32>
    %7 = arith.addf %3, %6 : vector<8x128xf32>
    %c0_6 = arith.constant 0 : index
    %c0_7 = arith.constant 0 : index
    %8 = vector.load %arg12[%c0_6, %c0_7] : memref<8x128xf32, #tpu.memory_space<vmem>>, vector<8x128xf32>
    tpu.vector_store %arg12[%c0_6, %c0_7], %7 {strides = array<i32>} : memref<8x128xf32, #tpu.memory_space<vmem>>, vector<8x128xf32>,
    %c0_8 = arith.constant 0 : index
    %c0_9 = arith.constant 0 : index
    %9 = vector.load %arg13[%c0_8, %c0_9] : memref<8x128xf32, #tpu.memory_space<vmem>>, vector<8x128xf32>
    %c0_10 = arith.constant 0 : index
    %c0_11 = arith.constant 0 : index
    %10 = vector.load %arg3[%c0_10, %c0_11] : memref<8x1024xbf16, #tpu.memory_space<vmem>>, vector<8x1024xbf16>
    %c0_12 = arith.constant 0 : index
    %c0_13 = arith.constant 0 : index
    %11 = vector.load %arg4[%c0_12, %c0_13] : memref<1024x128xbf16, #tpu.memory_space<vmem>>, vector<1024x128xbf16>
    %cst_14 = arith.constant dense<0.000000e+00> : vector<8x128xf32>
    %12 = tpu.matmul %10, %11, %cst_14 {dimension_numbers = #tpu.dot_dimension_numbers<[1], [0], [0], [1], [0, 0, 1, 1], [], []>} : vector<8x1024xbf16>, vector<1024x128xbf16>, vector<8x128xf32> -> vector<8x128xf32>
    %13 = arith.addf %9, %12 : vector<8x128xf32>
    %c0_15 = arith.constant 0 : index
    %c0_16 = arith.constant 0 : index
    %14 = vector.load %arg13[%c0_15, %c0_16] : memref<8x128xf32, #tpu.memory_space<vmem>>, vector<8x128xf32>
    tpu.vector_store %arg13[%c0_15, %c0_16], %13 {strides = array<i32>} : memref<8x128xf32, #tpu.memory_space<vmem>>, vector<8x128xf32>,
    %c0_i32_17 = arith.constant 0 : i32
    %15 = arith.cmpi eq, %arg1, %c0_i32_17 : i32
    %16 = arith.extui %15 : i1 to i32
    %c0_i32_18 = arith.constant 0 : i32
    %17 = arith.cmpi ne, %16, %c0_i32_18 : i32
    scf.if %17 {
      %c0_19 = arith.constant 0 : index
      %c0_20 = arith.constant 0 : index
      %18 = vector.load %arg12[%c0_19, %c0_20] : memref<8x128xf32, #tpu.memory_space<vmem>>, vector<8x128xf32>
      %c0_21 = arith.constant 0 : index
      %c0_22 = arith.constant 0 : index
      %19 = vector.load %arg5[%c0_21, %c0_22] : memref<1x128xf32, #tpu.memory_space<vmem>>, vector<1x128xf32>
      %20 = vector.broadcast %19 : vector<1x128xf32> to vector<8x128xf32>
      %21 = arith.addf %18, %20 : vector<8x128xf32>
      %22 = arith.truncf %21 : vector<8x128xf32> to vector<8x128xbf16>
      %c0_23 = arith.constant 0 : index
      %c0_24 = arith.constant 0 : index
      %23 = vector.load %arg6[%c0_23, %c0_24] : memref<128x128xbf16, #tpu.memory_space<vmem>>, vector<128x128xbf16>
      %cst_25 = arith.constant dense<0.000000e+00> : vector<8x128xf32>
      %24 = tpu.matmul %22, %23, %cst_25 {dimension_numbers = #tpu.dot_dimension_numbers<[1], [0], [0], [1], [0, 0, 1, 1], [], []>} : vector<8x128xbf16>, vector<128x128xbf16>, vector<8x128xf32> -> vector<8x128xf32>
      %c0_26 = arith.constant 0 : index
      %c0_27 = arith.constant 0 : index
      %25 = vector.load %arg7[%c0_26, %c0_27] : memref<1x128xf32, #tpu.memory_space<vmem>>, vector<1x128xf32>
      %26 = vector.broadcast %25 : vector<1x128xf32> to vector<8x128xf32>
      %27 = arith.addf %24, %26 : vector<8x128xf32>
      %cst_28 = arith.constant 0.000000e+00 : f32
      %28 = vector.broadcast %cst_28 : f32 to vector<8x128xf32>
      %29 = arith.maximumf %27, %28 : vector<8x128xf32>
      %30 = arith.truncf %29 : vector<8x128xf32> to vector<8x128xbf16>
      %c0_29 = arith.constant 0 : index
      %c0_30 = arith.constant 0 : index
      %31 = vector.load %arg8[%c0_29, %c0_30] : memref<128x128xbf16, #tpu.memory_space<vmem>>, vector<128x128xbf16>
      %cst_31 = arith.constant dense<0.000000e+00> : vector<8x128xf32>
      %32 = tpu.matmul %30, %31, %cst_31 {dimension_numbers = #tpu.dot_dimension_numbers<[1], [0], [0], [1], [0, 0, 1, 1], [], []>} : vector<8x128xbf16>, vector<128x128xbf16>, vector<8x128xf32> -> vector<8x128xf32>
      %c0_32 = arith.constant 0 : index
      %c0_33 = arith.constant 0 : index
      %33 = vector.load %arg9[%c0_32, %c0_33] : memref<1x128xf32, #tpu.memory_space<vmem>>, vector<1x128xf32>
      %34 = vector.broadcast %33 : vector<1x128xf32> to vector<8x128xf32>
      %35 = arith.addf %32, %34 : vector<8x128xf32>
      %c0_34 = arith.constant 0 : index
      %c0_35 = arith.constant 0 : index
      %36 = vector.load %arg10[%c0_34, %c0_35] : memref<8x128xf32, #tpu.memory_space<vmem>>, vector<8x128xf32>
      tpu.vector_store %arg10[%c0_34, %c0_35], %35 {strides = array<i32>} : memref<8x128xf32, #tpu.memory_space<vmem>>, vector<8x128xf32>,
      %c0_36 = arith.constant 0 : index
      %c0_37 = arith.constant 0 : index
      %37 = vector.load %arg13[%c0_36, %c0_37] : memref<8x128xf32, #tpu.memory_space<vmem>>, vector<8x128xf32>
      %c0_38 = arith.constant 0 : index
      %c0_39 = arith.constant 0 : index
      %38 = vector.load %arg5[%c0_38, %c0_39] : memref<1x128xf32, #tpu.memory_space<vmem>>, vector<1x128xf32>
      %39 = vector.broadcast %38 : vector<1x128xf32> to vector<8x128xf32>
      %40 = arith.addf %37, %39 : vector<8x128xf32>
      %41 = arith.truncf %40 : vector<8x128xf32> to vector<8x128xbf16>
      %c0_40 = arith.constant 0 : index
      %c0_41 = arith.constant 0 : index
      %42 = vector.load %arg6[%c0_40, %c0_41] : memref<128x128xbf16, #tpu.memory_space<vmem>>, vector<128x128xbf16>
      %cst_42 = arith.constant dense<0.000000e+00> : vector<8x128xf32>
      %43 = tpu.matmul %41, %42, %cst_42 {dimension_numbers = #tpu.dot_dimension_numbers<[1], [0], [0], [1], [0, 0, 1, 1], [], []>} : vector<8x128xbf16>, vector<128x128xbf16>, vector<8x128xf32> -> vector<8x128xf32>
      %c0_43 = arith.constant 0 : index
      %c0_44 = arith.constant 0 : index
      %44 = vector.load %arg7[%c0_43, %c0_44] : memref<1x128xf32, #tpu.memory_space<vmem>>, vector<1x128xf32>
      %45 = vector.broadcast %44 : vector<1x128xf32> to vector<8x128xf32>
      %46 = arith.addf %43, %45 : vector<8x128xf32>
      %cst_45 = arith.constant 0.000000e+00 : f32
      %47 = vector.broadcast %cst_45 : f32 to vector<8x128xf32>
      %48 = arith.maximumf %46, %47 : vector<8x128xf32>
      %49 = arith.truncf %48 : vector<8x128xf32> to vector<8x128xbf16>
      %c0_46 = arith.constant 0 : index
      %c0_47 = arith.constant 0 : index
      %50 = vector.load %arg8[%c0_46, %c0_47] : memref<128x128xbf16, #tpu.memory_space<vmem>>, vector<128x128xbf16>
      %cst_48 = arith.constant dense<0.000000e+00> : vector<8x128xf32>
      %51 = tpu.matmul %49, %50, %cst_48 {dimension_numbers = #tpu.dot_dimension_numbers<[1], [0], [0], [1], [0, 0, 1, 1], [], []>} : vector<8x128xbf16>, vector<128x128xbf16>, vector<8x128xf32> -> vector<8x128xf32>
      %c0_49 = arith.constant 0 : index
      %c0_50 = arith.constant 0 : index
      %52 = vector.load %arg9[%c0_49, %c0_50] : memref<1x128xf32, #tpu.memory_space<vmem>>, vector<1x128xf32>
      %53 = vector.broadcast %52 : vector<1x128xf32> to vector<8x128xf32>
      %54 = arith.addf %51, %53 : vector<8x128xf32>
      %c0_51 = arith.constant 0 : index
      %c0_52 = arith.constant 0 : index
      %55 = vector.load %arg11[%c0_51, %c0_52] : memref<8x128xf32, #tpu.memory_space<vmem>>, vector<8x128xf32>
      tpu.vector_store %arg11[%c0_51, %c0_52], %54 {strides = array<i32>} : memref<8x128xf32, #tpu.memory_space<vmem>>, vector<8x128xf32>,
    } else {
    }
    return
  }
  func.func @transform_0(%arg0: i32, %arg1: i32) -> (i32, i32) {
    %c0_i32 = arith.constant 0 : i32
    return %arg0, %arg1 : i32, i32
  }
  func.func @transform_1(%arg0: i32, %arg1: i32) -> (i32, i32) {
    %c0_i32 = arith.constant 0 : i32
    return %arg0, %arg1 : i32, i32
  }
  func.func @transform_2(%arg0: i32, %arg1: i32) -> (i32, i32) {
    %c0_i32 = arith.constant 0 : i32
    %c0_i32_0 = arith.constant 0 : i32
    return %arg1, %c0_i32 : i32, i32
  }
  func.func @transform_3(%arg0: i32, %arg1: i32) -> (i32, i32) {
    %c0_i32 = arith.constant 0 : i32
    %c0_i32_0 = arith.constant 0 : i32
    %c0_i32_1 = arith.constant 0 : i32
    return %c0_i32, %c0_i32_0 : i32, i32
  }
  func.func @transform_4(%arg0: i32, %arg1: i32) -> (i32, i32) {
    %c0_i32 = arith.constant 0 : i32
    %c0_i32_0 = arith.constant 0 : i32
    %c0_i32_1 = arith.constant 0 : i32
    return %c0_i32, %c0_i32_0 : i32, i32
  }
  func.func @transform_5(%arg0: i32, %arg1: i32) -> (i32, i32) {
    %c0_i32 = arith.constant 0 : i32
    %c0_i32_0 = arith.constant 0 : i32
    %c0_i32_1 = arith.constant 0 : i32
    return %c0_i32, %c0_i32_0 : i32, i32
  }
  func.func @transform_6(%arg0: i32, %arg1: i32) -> (i32, i32) {
    %c0_i32 = arith.constant 0 : i32
    %c0_i32_0 = arith.constant 0 : i32
    %c0_i32_1 = arith.constant 0 : i32
    return %c0_i32, %c0_i32_0 : i32, i32
  }
  func.func @transform_7(%arg0: i32, %arg1: i32) -> (i32, i32) {
    %c0_i32 = arith.constant 0 : i32
    %c0_i32_0 = arith.constant 0 : i32
    %c0_i32_1 = arith.constant 0 : i32
    return %c0_i32, %c0_i32_0 : i32, i32
  }
  func.func @transform_8(%arg0: i32, %arg1: i32) -> (i32, i32) {
    %c0_i32 = arith.constant 0 : i32
    %c0_i32_0 = arith.constant 0 : i32
    return %arg0, %c0_i32 : i32, i32
  }
  func.func @transform_9(%arg0: i32, %arg1: i32) -> (i32, i32) {
    %c0_i32 = arith.constant 0 : i32
    %c0_i32_0 = arith.constant 0 : i32
    return %arg0, %c0_i32 : i32, i32
  }
}

module attributes {stable_mosaic.version = 11 : i64} {
  func.func @_manifold_kernel(%arg0: i32, %arg1: memref<8x128xf32, #tpu.memory_space<vmem>>, %arg2: memref<8x128xf32, #tpu.memory_space<vmem>>, %arg3: memref<128x128xf32, #tpu.memory_space<vmem>>, %arg4: memref<128x128xf32, #tpu.memory_space<vmem>>, %arg5: memref<128x128xf32, #tpu.memory_space<vmem>>, %arg6: memref<1x1xf32, #tpu.memory_space<vmem>>, %arg7: memref<1x1xf32, #tpu.memory_space<vmem>>, %arg8: memref<1x1xf32, #tpu.memory_space<vmem>>, %arg9: memref<1x1xf32, #tpu.memory_space<vmem>>) attributes {dimension_semantics = [#tpu.dimension_semantics<arbitrary>], iteration_bounds = array<i64: 1>, scalar_prefetch = 0 : i64, scratch_operands = 3 : i64, tpu.core_type = #tpu.core_type<tc>, window_params = [{transform_indices = @transform_0, window_bounds = array<i64: 8, 128>}, {transform_indices = @transform_1, window_bounds = array<i64: 8, 128>}, {pipeline_mode = #tpu.pipeline_mode<synchronous>, transform_indices = @transform_2, window_bounds = array<i64: 128, 128>}, {pipeline_mode = #tpu.pipeline_mode<synchronous>, transform_indices = @transform_3, window_bounds = array<i64: 128, 128>}, {pipeline_mode = #tpu.pipeline_mode<synchronous>, transform_indices = @transform_4, window_bounds = array<i64: 128, 128>}, {pipeline_mode = #tpu.pipeline_mode<synchronous>, transform_indices = @transform_5, window_bounds = array<i64: 1, 1>}]} {
    %c0_i32 = arith.constant 0 : i32
    %0 = arith.cmpi eq, %arg0, %c0_i32 : i32
    %1 = arith.extui %0 : i1 to i32
    %c0_i32_0 = arith.constant 0 : i32
    %2 = arith.cmpi ne, %1, %c0_i32_0 : i32
    scf.if %2 {
      %cst_29 = arith.constant 0.000000e+00 : f32
      %44 = vector.broadcast %cst_29 : f32 to vector<1x1xf32>
      %c0_30 = arith.constant 0 : index
      %c0_31 = arith.constant 0 : index
      %45 = vector.load %arg7[%c0_30, %c0_31] : memref<1x1xf32, #tpu.memory_space<vmem>>, vector<1x1xf32>
      tpu.vector_store %arg7[%c0_30, %c0_31], %44 {strides = array<i32>} : memref<1x1xf32, #tpu.memory_space<vmem>>, vector<1x1xf32>,
      %cst_32 = arith.constant 0.000000e+00 : f32
      %46 = vector.broadcast %cst_32 : f32 to vector<1x1xf32>
      %c0_33 = arith.constant 0 : index
      %c0_34 = arith.constant 0 : index
      %47 = vector.load %arg8[%c0_33, %c0_34] : memref<1x1xf32, #tpu.memory_space<vmem>>, vector<1x1xf32>
      tpu.vector_store %arg8[%c0_33, %c0_34], %46 {strides = array<i32>} : memref<1x1xf32, #tpu.memory_space<vmem>>, vector<1x1xf32>,
      %cst_35 = arith.constant 0.000000e+00 : f32
      %48 = vector.broadcast %cst_35 : f32 to vector<1x1xf32>
      %c0_36 = arith.constant 0 : index
      %c0_37 = arith.constant 0 : index
      %49 = vector.load %arg9[%c0_36, %c0_37] : memref<1x1xf32, #tpu.memory_space<vmem>>, vector<1x1xf32>
      tpu.vector_store %arg9[%c0_36, %c0_37], %48 {strides = array<i32>} : memref<1x1xf32, #tpu.memory_space<vmem>>, vector<1x1xf32>,
    } else {
    }
    %c0 = arith.constant 0 : index
    %c0_1 = arith.constant 0 : index
    %3 = vector.load %arg1[%c0, %c0_1] : memref<8x128xf32, #tpu.memory_space<vmem>>, vector<8x128xf32>
    %c0_2 = arith.constant 0 : index
    %c0_3 = arith.constant 0 : index
    %4 = vector.load %arg2[%c0_2, %c0_3] : memref<8x128xf32, #tpu.memory_space<vmem>>, vector<8x128xf32>
    %c0_4 = arith.constant 0 : index
    %c0_5 = arith.constant 0 : index
    %5 = vector.load %arg4[%c0_4, %c0_5] : memref<128x128xf32, #tpu.memory_space<vmem>>, vector<128x128xf32>
    %cst = arith.constant dense<0.000000e+00> : vector<8x128xf32>
    %6 = tpu.matmul %3, %5, %cst {dimension_numbers = #tpu.dot_dimension_numbers<[1], [0], [0], [1], [0, 0, 1, 1], [], []>} : vector<8x128xf32>, vector<128x128xf32>, vector<8x128xf32> -> vector<8x128xf32>
    %7 = math.tanh %6 : vector<8x128xf32>
    %c0_6 = arith.constant 0 : index
    %c0_7 = arith.constant 0 : index
    %8 = vector.load %arg5[%c0_6, %c0_7] : memref<128x128xf32, #tpu.memory_space<vmem>>, vector<128x128xf32>
    %cst_8 = arith.constant dense<0.000000e+00> : vector<8x128xf32>
    %9 = tpu.matmul %3, %8, %cst_8 {dimension_numbers = #tpu.dot_dimension_numbers<[1], [0], [0], [1], [0, 0, 1, 1], [], []>} : vector<8x128xf32>, vector<128x128xf32>, vector<8x128xf32> -> vector<8x128xf32>
    %c0_9 = arith.constant 0 : index
    %c0_10 = arith.constant 0 : index
    %10 = vector.load %arg3[%c0_9, %c0_10] : memref<128x128xf32, #tpu.memory_space<vmem>>, vector<128x128xf32>
    %cst_11 = arith.constant dense<0.000000e+00> : vector<8x128xf32>
    %11 = tpu.matmul %3, %10, %cst_11 {dimension_numbers = #tpu.dot_dimension_numbers<[1], [0], [0], [1], [0, 0, 1, 1], [], []>} : vector<8x128xf32>, vector<128x128xf32>, vector<8x128xf32> -> vector<8x128xf32>
    %12 = arith.addf %11, %9 : vector<8x128xf32>
    %13 = arith.subf %12, %4 : vector<8x128xf32>
    %c0_12 = arith.constant 0 : index
    %c0_13 = arith.constant 0 : index
    %14 = vector.load %arg7[%c0_12, %c0_13] : memref<1x1xf32, #tpu.memory_space<vmem>>, vector<1x1xf32>
    %15 = arith.mulf %13, %13 : vector<8x128xf32>
    %16 = vector.shape_cast %15 : vector<8x128xf32> to vector<1x8x128xf32>
    %cst_14 = arith.constant dense<0.000000e+00> : vector<1xf32>
    %17 = vector.multi_reduction <add>, %16, %cst_14 [1, 2] : vector<1x8x128xf32> to vector<1xf32>
    %18 = vector.shape_cast %17 : vector<1xf32> to vector<1x1x1xf32>
    %19 = vector.extract %18[0, 0, 0] : f32 from vector<1x1x1xf32>
    %20 = vector.broadcast %19 : f32 to vector<1x1xf32>
    %21 = arith.addf %14, %20 : vector<1x1xf32>
    %c0_15 = arith.constant 0 : index
    %c0_16 = arith.constant 0 : index
    %22 = vector.load %arg7[%c0_15, %c0_16] : memref<1x1xf32, #tpu.memory_space<vmem>>, vector<1x1xf32>
    tpu.vector_store %arg7[%c0_15, %c0_16], %21 {strides = array<i32>} : memref<1x1xf32, #tpu.memory_space<vmem>>, vector<1x1xf32>,
    %c0_17 = arith.constant 0 : index
    %c0_18 = arith.constant 0 : index
    %23 = vector.load %arg8[%c0_17, %c0_18] : memref<1x1xf32, #tpu.memory_space<vmem>>, vector<1x1xf32>
    %24 = arith.mulf %7, %7 : vector<8x128xf32>
    %25 = vector.shape_cast %24 : vector<8x128xf32> to vector<1x8x128xf32>
    %cst_19 = arith.constant dense<0.000000e+00> : vector<1xf32>
    %26 = vector.multi_reduction <add>, %25, %cst_19 [1, 2] : vector<1x8x128xf32> to vector<1xf32>
    %27 = vector.shape_cast %26 : vector<1xf32> to vector<1x1x1xf32>
    %28 = vector.extract %27[0, 0, 0] : f32 from vector<1x1x1xf32>
    %29 = vector.broadcast %28 : f32 to vector<1x1xf32>
    %30 = arith.addf %23, %29 : vector<1x1xf32>
    %c0_20 = arith.constant 0 : index
    %c0_21 = arith.constant 0 : index
    %31 = vector.load %arg8[%c0_20, %c0_21] : memref<1x1xf32, #tpu.memory_space<vmem>>, vector<1x1xf32>
    tpu.vector_store %arg8[%c0_20, %c0_21], %30 {strides = array<i32>} : memref<1x1xf32, #tpu.memory_space<vmem>>, vector<1x1xf32>,
    %c0_22 = arith.constant 0 : index
    %c0_23 = arith.constant 0 : index
    %32 = vector.load %arg9[%c0_22, %c0_23] : memref<1x1xf32, #tpu.memory_space<vmem>>, vector<1x1xf32>
    %33 = arith.mulf %9, %9 : vector<8x128xf32>
    %34 = vector.shape_cast %33 : vector<8x128xf32> to vector<1x8x128xf32>
    %cst_24 = arith.constant dense<0.000000e+00> : vector<1xf32>
    %35 = vector.multi_reduction <add>, %34, %cst_24 [1, 2] : vector<1x8x128xf32> to vector<1xf32>
    %36 = vector.shape_cast %35 : vector<1xf32> to vector<1x1x1xf32>
    %37 = vector.extract %36[0, 0, 0] : f32 from vector<1x1x1xf32>
    %38 = vector.broadcast %37 : f32 to vector<1x1xf32>
    %39 = arith.addf %32, %38 : vector<1x1xf32>
    %c0_25 = arith.constant 0 : index
    %c0_26 = arith.constant 0 : index
    %40 = vector.load %arg9[%c0_25, %c0_26] : memref<1x1xf32, #tpu.memory_space<vmem>>, vector<1x1xf32>
    tpu.vector_store %arg9[%c0_25, %c0_26], %39 {strides = array<i32>} : memref<1x1xf32, #tpu.memory_space<vmem>>, vector<1x1xf32>,
    %c0_i32_27 = arith.constant 0 : i32
    %41 = arith.cmpi eq, %arg0, %c0_i32_27 : i32
    %42 = arith.extui %41 : i1 to i32
    %c0_i32_28 = arith.constant 0 : i32
    %43 = arith.cmpi ne, %42, %c0_i32_28 : i32
    scf.if %43 {
      %c0_29 = arith.constant 0 : index
      %c0_30 = arith.constant 0 : index
      %44 = vector.load %arg7[%c0_29, %c0_30] : memref<1x1xf32, #tpu.memory_space<vmem>>, vector<1x1xf32>
      %cst_31 = arith.constant 1.024000e+03 : f32
      %45 = vector.broadcast %cst_31 : f32 to vector<1x1xf32>
      %46 = arith.divf %44, %45 : vector<1x1xf32>
      %c0_32 = arith.constant 0 : index
      %c0_33 = arith.constant 0 : index
      %47 = vector.load %arg8[%c0_32, %c0_33] : memref<1x1xf32, #tpu.memory_space<vmem>>, vector<1x1xf32>
      %cst_34 = arith.constant 5.000000e-01 : f32
      %48 = vector.broadcast %cst_34 : f32 to vector<1x1xf32>
      %49 = arith.mulf %48, %47 : vector<1x1xf32>
      %cst_35 = arith.constant 1.024000e+03 : f32
      %50 = vector.broadcast %cst_35 : f32 to vector<1x1xf32>
      %51 = arith.divf %49, %50 : vector<1x1xf32>
      %cst_36 = arith.constant 1.000000e-01 : f32
      %52 = vector.broadcast %cst_36 : f32 to vector<1x1xf32>
      %53 = arith.mulf %52, %51 : vector<1x1xf32>
      %54 = arith.addf %46, %53 : vector<1x1xf32>
      %c0_37 = arith.constant 0 : index
      %c0_38 = arith.constant 0 : index
      %55 = vector.load %arg9[%c0_37, %c0_38] : memref<1x1xf32, #tpu.memory_space<vmem>>, vector<1x1xf32>
      %cst_39 = arith.constant 8.000000e+00 : f32
      %56 = vector.broadcast %cst_39 : f32 to vector<1x1xf32>
      %57 = arith.divf %55, %56 : vector<1x1xf32>
      %cst_40 = arith.constant 0.00999999977 : f32
      %58 = vector.broadcast %cst_40 : f32 to vector<1x1xf32>
      %59 = arith.mulf %58, %57 : vector<1x1xf32>
      %60 = arith.addf %54, %59 : vector<1x1xf32>
      %c0_41 = arith.constant 0 : index
      %c0_42 = arith.constant 0 : index
      %61 = vector.load %arg6[%c0_41, %c0_42] : memref<1x1xf32, #tpu.memory_space<vmem>>, vector<1x1xf32>
      tpu.vector_store %arg6[%c0_41, %c0_42], %60 {strides = array<i32>} : memref<1x1xf32, #tpu.memory_space<vmem>>, vector<1x1xf32>,
    } else {
    }
    return
  }
  func.func @transform_0(%arg0: i32) -> (i32, i32) {
    %c0_i32 = arith.constant 0 : i32
    %c0_i32_0 = arith.constant 0 : i32
    return %arg0, %c0_i32 : i32, i32
  }
  func.func @transform_1(%arg0: i32) -> (i32, i32) {
    %c0_i32 = arith.constant 0 : i32
    %c0_i32_0 = arith.constant 0 : i32
    return %arg0, %c0_i32 : i32, i32
  }
  func.func @transform_2(%arg0: i32) -> (i32, i32) {
    %c0_i32 = arith.constant 0 : i32
    %c0_i32_0 = arith.constant 0 : i32
    %c0_i32_1 = arith.constant 0 : i32
    return %c0_i32, %c0_i32_0 : i32, i32
  }
  func.func @transform_3(%arg0: i32) -> (i32, i32) {
    %c0_i32 = arith.constant 0 : i32
    %c0_i32_0 = arith.constant 0 : i32
    %c0_i32_1 = arith.constant 0 : i32
    return %c0_i32, %c0_i32_0 : i32, i32
  }
  func.func @transform_4(%arg0: i32) -> (i32, i32) {
    %c0_i32 = arith.constant 0 : i32
    %c0_i32_0 = arith.constant 0 : i32
    %c0_i32_1 = arith.constant 0 : i32
    return %c0_i32, %c0_i32_0 : i32, i32
  }
  func.func @transform_5(%arg0: i32) -> (i32, i32) {
    %c0_i32 = arith.constant 0 : i32
    %c0_i32_0 = arith.constant 0 : i32
    %c0_i32_1 = arith.constant 0 : i32
    return %c0_i32, %c0_i32_0 : i32, i32
  }
}

</mosaic_0001>

<llo_original>
// kernel: _lambda_.3
$region0: #{_lambda_.3}
  #allocation0 [shape = 'u32[]', space=smem, size = 0x4, offset = 0x4, fixed_abs, tag = 'smem constant byte address 0x4 - core index']
  #allocation1 [shape = 'u32[144,128]{1,0:T(1,128)}', space=vmem, size = 0x12000, scoped, tag = 'internal scratch']
  #allocation2 [shape = 'f32[1,1]{1,0:T(1,128)}', space=vmem, size = 0x200, scoped, tag = 'scratch operand']
  #allocation3 [shape = 'f32[1,1]{1,0:T(1,128)}', space=vmem, size = 0x200, scoped, tag = 'scratch operand']
  #allocation4 [shape = 'f32[1,1]{1,0:T(1,128)}', space=vmem, size = 0x200, scoped, tag = 'scratch operand']
  %s0 = inlined_call_operand.vmem [shape: f32[8,128], index: 0, kind: input, shape index: {}]
  %s1 = inlined_call_operand.vmem [shape: f32[8,128], index: 1, kind: input, shape index: {}]
  %s2 = inlined_call_operand.vmem [shape: f32[128,128], index: 2, kind: input, shape index: {}]
  %s3 = inlined_call_operand.vmem [shape: f32[128,128], index: 3, kind: input, shape index: {}]
  %s4 = inlined_call_operand.vmem [shape: f32[128,128], index: 4, kind: input, shape index: {}]
  %s5 = inlined_call_operand.hbm [shape: f32[1,1], index: 5, kind: output, shape index: {}]
  %s6 = sld [smem:[#allocation0]]
  $region38: #{_lambda_.3} parent=0
    _
  %s8 = ssub.s32 1, %s6
  %s9 = scalar_select 0, %s8, %s6
  $region1: #{_lambda_.3} parent=0
    #allocation5 [shape = 'u8[512]{0}', space=vmem, size = 0x400, scoped, tag = 'output window, operand 0, single buffered']
    #allocation6 [shape = 's32[1]{0}', space=sflag, size = 0x4, scoped, tag = 'scoped memory for _lambda_.3']
    %10 = vsyncpa [#allocation6], 0
    // Predicated region
    $region2: #{_lambda_.3} parent=1 // pred_check
      _
    $region3: #{_lambda_.3} parent=1 // pred_check_branch
      %12 = sbr.rel (0) target = $region5
    $region4: #{_lambda_.3} parent=1 // pred_region
      _
    $region5: #{_lambda_.3} parent=1 // pred_fallthru
      _
    // Predicated region
    $region6: #{_lambda_.3} parent=1 // pred_check
      _
    $region7: #{_lambda_.3} parent=1 // pred_check_branch
      %14 = sbr.rel (0) target = $region9
    $region8: #{_lambda_.3} parent=1 // pred_region
      _
    $region9: #{_lambda_.3} parent=1 // pred_fallthru
      _
    // Predicated region
    $region10: #{_lambda_.3} parent=1 // pred_check
      _
    $region11: #{_lambda_.3} parent=1 // pred_check_branch
      %16 = sbr.rel (0) target = $region13
    $region12: #{_lambda_.3} parent=1 // pred_region
      _
    $region13: #{_lambda_.3} parent=1 // pred_fallthru
      _
    // Predicated region
    $region14: #{_lambda_.3} parent=1 // pred_check
      _
    $region15: #{_lambda_.3} parent=1 // pred_check_branch
      %18 = sbr.rel (0) target = $region17
    $region16: #{_lambda_.3} parent=1 // pred_region
      _
    $region17: #{_lambda_.3} parent=1 // pred_fallthru
      _
    // Predicated region
    $region18: #{_lambda_.3} parent=1 // pred_check
      _
    $region19: #{_lambda_.3} parent=1 // pred_check_branch
      %20 = sbr.rel (0) target = $region21
    $region20: #{_lambda_.3} parent=1 // pred_region
      _
    $region21: #{_lambda_.3} parent=1 // pred_fallthru
      _
    %p21 = scmp.eq.s32.totalorder 0, 0
    // Predicated region
    $region22: #{_lambda_.3} parent=1 // pred_check
      %p22 = pneg %p21
    $region23: #{_lambda_.3} parent=1 // pred_check_branch
      %24 = sbr.rel (%p22) target = $region25
    $region24: #{_lambda_.3} parent=1 // pred_region
      %vm25 = vcmask 0
      %26 = vst.msk [vmem:[#allocation2] sm:$0x1] %vm25, 0.0
      %27 = vst.msk [vmem:[#allocation3] sm:$0x1] %vm25, 0.0
      %28 = vst.msk [vmem:[#allocation4] sm:$0x1] %vm25, 0.0
    $region25: #{_lambda_.3} parent=1 // pred_fallthru
      _
    %v29 = vld [vmem:[%s0] sm:$0xff]
    %v30 = vld [vmem:[%s1] sm:$0xff]
    %v31 = vld [vmem:[%s3] sm:$0xff]
    %v32 = vld [vmem:[%s3 + $0x8] sm:$0xff]
    %v33 = vld [vmem:[%s3 + $0x10] sm:$0xff]
    %v34 = vld [vmem:[%s3 + $0x18] sm:$0xff]
    %v35 = vld [vmem:[%s3 + $0x20] sm:$0xff]
    %v36 = vld [vmem:[%s3 + $0x28] sm:$0xff]
    %v37 = vld [vmem:[%s3 + $0x30] sm:$0xff]
    %v38 = vld [vmem:[%s3 + $0x38] sm:$0xff]
    %v39 = vld [vmem:[%s3 + $0x40] sm:$0xff]
    %v40 = vld [vmem:[%s3 + $0x48] sm:$0xff]
    %v41 = vld [vmem:[%s3 + $0x50] sm:$0xff]
    %v42 = vld [vmem:[%s3 + $0x58] sm:$0xff]
    %v43 = vld [vmem:[%s3 + $0x60] sm:$0xff]
    %v44 = vld [vmem:[%s3 + $0x68] sm:$0xff]
    %v45 = vld [vmem:[%s3 + $0x70] sm:$0xff]
    %v46 = vld [vmem:[%s3 + $0x78] sm:$0xff]
    %47 = vmatprep.subr.mxu0 0.0
    %48 = vmatpush1.msra.mxu0 %v31
    %49 = vmatprep.subr.mxu0 0.0
    %50 = vmatpush1.msra.mxu0 %v32
    %51 = vmatprep.subr.mxu0 0.0
    %52 = vmatpush1.msra.mxu0 %v33
    %53 = vmatprep.subr.mxu0 0.0
    %54 = vmatpush1.msra.mxu0 %v34
    %55 = vmatprep.subr.mxu0 0.0
    %56 = vmatpush1.msra.mxu0 %v35
    %57 = vmatprep.subr.mxu0 0.0
    %58 = vmatpush1.msra.mxu0 %v36
    %59 = vmatprep.subr.mxu0 0.0
    %60 = vmatpush1.msra.mxu0 %v37
    %61 = vmatprep.subr.mxu0 0.0
    %62 = vmatpush1.msra.mxu0 %v38
    %63 = vmatprep.subr.mxu0 0.0
    %64 = vmatpush1.msra.mxu0 %v39
    %65 = vmatprep.subr.mxu0 0.0
    %66 = vmatpush1.msra.mxu0 %v40
    %67 = vmatprep.subr.mxu0 0.0
    %68 = vmatpush1.msra.mxu0 %v41
    %69 = vmatprep.subr.mxu0 0.0
    %70 = vmatpush1.msra.mxu0 %v42
    %71 = vmatprep.subr.mxu0 0.0
    %72 = vmatpush1.msra.mxu0 %v43
    %73 = vmatprep.subr.mxu0 0.0
    %74 = vmatpush1.msra.mxu0 %v44
    %75 = vmatprep.subr.mxu0 0.0
    %76 = vmatpush1.msra.mxu0 %v45
    %77 = vmatprep.subr.mxu0 0.0
    %78 = vmatpush1.msra.mxu0 %v46
    %79 = vmatprep.subr.mxu0 0.0
    %80 = vmatpush1.msra.mxu0 0.0
    %81 = vmatprep.subr.mxu0 0.0
    %82 = vmatpush1.msra.mxu0 0.0
    %83 = vmatprep.subr.mxu0 0.0
    %84 = vmatpush1.msra.mxu0 0.0
    %85 = vmatprep.subr.mxu0 0.0
    %86 = vmatpush1.msra.mxu0 0.0
    %87 = vmatprep.subr.mxu0 0.0
    %88 = vmatpush1.msra.mxu0 0.0
    %89 = vmatprep.subr.mxu0 0.0
    %90 = vmatpush1.msra.mxu0 0.0
    %91 = vmatprep.subr.mxu0 0.0
    %92 = vmatpush1.msra.mxu0 0.0
    %93 = vmatprep.subr.mxu0 0.0
    %94 = vmatpush1.msra.mxu0 0.0
    %95 = vmatprep.subr.mxu0 0.0
    %96 = vmatpush1.msra.mxu0 0.0
    %97 = vmatprep.subr.mxu0 0.0
    %98 = vmatpush1.msra.mxu0 0.0
    %99 = vmatprep.subr.mxu0 0.0
    %100 = vmatpush1.msra.mxu0 0.0
    %101 = vmatprep.subr.mxu0 0.0
    %102 = vmatpush1.msra.mxu0 0.0
    %103 = vmatprep.subr.mxu0 0.0
    %104 = vmatpush1.msra.mxu0 0.0
    %105 = vmatprep.subr.mxu0 0.0
    %106 = vmatpush1.msra.mxu0 0.0
    %107 = vmatprep.subr.mxu0 0.0
    %108 = vmatpush1.msra.mxu0 0.0
    %109 = vmatprep.subr.mxu0 0.0
    %110 = vmatpush1.msra.mxu0 0.0
    %111 = vmatprep.mubr.f32.mxu0 0.0
    %112 = vmatmul.mubr.f32.gmra.mrb[0].mxu0 %v29
    %v113 = vpop.f32.mrb[0].mxu0
    %v114 = vadd.f32 0.0, %v113
    %v115 = vpop.f32.mrb[0].mxu0
    %116 = vdwg.mxu0
    %v117 = vtanh.pop %v114
    %v118 = vld [vmem:[%s4] sm:$0xff]
    %v119 = vld [vmem:[%s4 + $0x8] sm:$0xff]
    %v120 = vld [vmem:[%s4 + $0x10] sm:$0xff]
    %v121 = vld [vmem:[%s4 + $0x18] sm:$0xff]
    %v122 = vld [vmem:[%s4 + $0x20] sm:$0xff]
    %v123 = vld [vmem:[%s4 + $0x28] sm:$0xff]
    %v124 = vld [vmem:[%s4 + $0x30] sm:$0xff]
    %v125 = vld [vmem:[%s4 + $0x38] sm:$0xff]
    %v126 = vld [vmem:[%s4 + $0x40] sm:$0xff]
    %v127 = vld [vmem:[%s4 + $0x48] sm:$0xff]
    %v128 = vld [vmem:[%s4 + $0x50] sm:$0xff]
    %v129 = vld [vmem:[%s4 + $0x58] sm:$0xff]
    %v130 = vld [vmem:[%s4 + $0x60] sm:$0xff]
    %v131 = vld [vmem:[%s4 + $0x68] sm:$0xff]
    %v132 = vld [vmem:[%s4 + $0x70] sm:$0xff]
    %v133 = vld [vmem:[%s4 + $0x78] sm:$0xff]
    %134 = vmatprep.subr.mxu0 0.0
    %135 = vmatpush1.msra.mxu0 %v118
    %136 = vmatprep.subr.mxu0 0.0
    %137 = vmatpush1.msra.mxu0 %v119
    %138 = vmatprep.subr.mxu0 0.0
    %139 = vmatpush1.msra.mxu0 %v120
    %140 = vmatprep.subr.mxu0 0.0
    %141 = vmatpush1.msra.mxu0 %v121
    %142 = vmatprep.subr.mxu0 0.0
    %143 = vmatpush1.msra.mxu0 %v122
    %144 = vmatprep.subr.mxu0 0.0
    %145 = vmatpush1.msra.mxu0 %v123
    %146 = vmatprep.subr.mxu0 0.0
    %147 = vmatpush1.msra.mxu0 %v124
    %148 = vmatprep.subr.mxu0 0.0
    %149 = vmatpush1.msra.mxu0 %v125
    %150 = vmatprep.subr.mxu0 0.0
    %151 = vmatpush1.msra.mxu0 %v126
    %152 = vmatprep.subr.mxu0 0.0
    %153 = vmatpush1.msra.mxu0 %v127
    %154 = vmatprep.subr.mxu0 0.0
    %155 = vmatpush1.msra.mxu0 %v128
    %156 = vmatprep.subr.mxu0 0.0
    %157 = vmatpush1.msra.mxu0 %v129
    %158 = vmatprep.subr.mxu0 0.0
    %159 = vmatpush1.msra.mxu0 %v130
    %160 = vmatprep.subr.mxu0 0.0
    %161 = vmatpush1.msra.mxu0 %v131
    %162 = vmatprep.subr.mxu0 0.0
    %163 = vmatpush1.msra.mxu0 %v132
    %164 = vmatprep.subr.mxu0 0.0
    %165 = vmatpush1.msra.mxu0 %v133
    %166 = vmatprep.subr.mxu0 0.0
    %167 = vmatpush1.msra.mxu0 0.0
    %168 = vmatprep.subr.mxu0 0.0
    %169 = vmatpush1.msra.mxu0 0.0
    %170 = vmatprep.subr.mxu0 0.0
    %171 = vmatpush1.msra.mxu0 0.0
    %172 = vmatprep.subr.mxu0 0.0
    %173 = vmatpush1.msra.mxu0 0.0
    %174 = vmatprep.subr.mxu0 0.0
    %175 = vmatpush1.msra.mxu0 0.0
    %176 = vmatprep.subr.mxu0 0.0
    %177 = vmatpush1.msra.mxu0 0.0
    %178 = vmatprep.subr.mxu0 0.0
    %179 = vmatpush1.msra.mxu0 0.0
    %180 = vmatprep.subr.mxu0 0.0
    %181 = vmatpush1.msra.mxu0 0.0
    %182 = vmatprep.subr.mxu0 0.0
    %183 = vmatpush1.msra.mxu0 0.0
    %184 = vmatprep.subr.mxu0 0.0
    %185 = vmatpush1.msra.mxu0 0.0
    %186 = vmatprep.subr.mxu0 0.0
    %187 = vmatpush1.msra.mxu0 0.0
    %188 = vmatprep.subr.mxu0 0.0
    %189 = vmatpush1.msra.mxu0 0.0
    %190 = vmatprep.subr.mxu0 0.0
    %191 = vmatpush1.msra.mxu0 0.0
    %192 = vmatprep.subr.mxu0 0.0
    %193 = vmatpush1.msra.mxu0 0.0
    %194 = vmatprep.subr.mxu0 0.0
    %195 = vmatpush1.msra.mxu0 0.0
    %196 = vmatprep.subr.mxu0 0.0
    %197 = vmatpush1.msra.mxu0 0.0
    %198 = vmatprep.mubr.f32.mxu0 0.0
    %199 = vmatmul.mubr.f32.gmra.mrb[0].mxu0 %v29
    %v200 = vpop.f32.mrb[0].mxu0
    %v201 = vadd.f32 0.0, %v200
    %v202 = vpop.f32.mrb[0].mxu0
    %203 = vdwg.mxu0
    %v204 = vld [vmem:[%s2] sm:$0xff]
    %v205 = vld [vmem:[%s2 + $0x8] sm:$0xff]
    %v206 = vld [vmem:[%s2 + $0x10] sm:$0xff]
    %v207 = vld [vmem:[%s2 + $0x18] sm:$0xff]
    %v208 = vld [vmem:[%s2 + $0x20] sm:$0xff]
    %v209 = vld [vmem:[%s2 + $0x28] sm:$0xff]
    %v210 = vld [vmem:[%s2 + $0x30] sm:$0xff]
    %v211 = vld [vmem:[%s2 + $0x38] sm:$0xff]
    %v212 = vld [vmem:[%s2 + $0x40] sm:$0xff]
    %v213 = vld [vmem:[%s2 + $0x48] sm:$0xff]
    %v214 = vld [vmem:[%s2 + $0x50] sm:$0xff]
    %v215 = vld [vmem:[%s2 + $0x58] sm:$0xff]
    %v216 = vld [vmem:[%s2 + $0x60] sm:$0xff]
    %v217 = vld [vmem:[%s2 + $0x68] sm:$0xff]
    %v218 = vld [vmem:[%s2 + $0x70] sm:$0xff]
    %v219 = vld [vmem:[%s2 + $0x78] sm:$0xff]
    %220 = vmatprep.subr.mxu0 0.0
    %221 = vmatpush1.msra.mxu0 %v204
    %222 = vmatprep.subr.mxu0 0.0
    %223 = vmatpush1.msra.mxu0 %v205
    %224 = vmatprep.subr.mxu0 0.0
    %225 = vmatpush1.msra.mxu0 %v206
    %226 = vmatprep.subr.mxu0 0.0
    %227 = vmatpush1.msra.mxu0 %v207
    %228 = vmatprep.subr.mxu0 0.0
    %229 = vmatpush1.msra.mxu0 %v208
    %230 = vmatprep.subr.mxu0 0.0
    %231 = vmatpush1.msra.mxu0 %v209
    %232 = vmatprep.subr.mxu0 0.0
    %233 = vmatpush1.msra.mxu0 %v210
    %234 = vmatprep.subr.mxu0 0.0
    %235 = vmatpush1.msra.mxu0 %v211
    %236 = vmatprep.subr.mxu0 0.0
    %237 = vmatpush1.msra.mxu0 %v212
    %238 = vmatprep.subr.mxu0 0.0
    %239 = vmatpush1.msra.mxu0 %v213
    %240 = vmatprep.subr.mxu0 0.0
    %241 = vmatpush1.msra.mxu0 %v214
    %242 = vmatprep.subr.mxu0 0.0
    %243 = vmatpush1.msra.mxu0 %v215
    %244 = vmatprep.subr.mxu0 0.0
    %245 = vmatpush1.msra.mxu0 %v216
    %246 = vmatprep.subr.mxu0 0.0
    %247 = vmatpush1.msra.mxu0 %v217
    %248 = vmatprep.subr.mxu0 0.0
    %249 = vmatpush1.msra.mxu0 %v218
    %250 = vmatprep.subr.mxu0 0.0
    %251 = vmatpush1.msra.mxu0 %v219
    %252 = vmatprep.subr.mxu0 0.0
    %253 = vmatpush1.msra.mxu0 0.0
    %254 = vmatprep.subr.mxu0 0.0
    %255 = vmatpush1.msra.mxu0 0.0
    %256 = vmatprep.subr.mxu0 0.0
    %257 = vmatpush1.msra.mxu0 0.0
    %258 = vmatprep.subr.mxu0 0.0
    %259 = vmatpush1.msra.mxu0 0.0
    %260 = vmatprep.subr.mxu0 0.0
    %261 = vmatpush1.msra.mxu0 0.0
    %262 = vmatprep.subr.mxu0 0.0
    %263 = vmatpush1.msra.mxu0 0.0
    %264 = vmatprep.subr.mxu0 0.0
    %265 = vmatpush1.msra.mxu0 0.0
    %266 = vmatprep.subr.mxu0 0.0
    %267 = vmatpush1.msra.mxu0 0.0
    %268 = vmatprep.subr.mxu0 0.0
    %269 = vmatpush1.msra.mxu0 0.0
    %270 = vmatprep.subr.mxu0 0.0
    %271 = vmatpush1.msra.mxu0 0.0
    %272 = vmatprep.subr.mxu0 0.0
    %273 = vmatpush1.msra.mxu0 0.0
    %274 = vmatprep.subr.mxu0 0.0
    %275 = vmatpush1.msra.mxu0 0.0
    %276 = vmatprep.subr.mxu0 0.0
    %277 = vmatpush1.msra.mxu0 0.0
    %278 = vmatprep.subr.mxu0 0.0
    %279 = vmatpush1.msra.mxu0 0.0
    %280 = vmatprep.subr.mxu0 0.0
    %281 = vmatpush1.msra.mxu0 0.0
    %282 = vmatprep.subr.mxu0 0.0
    %283 = vmatpush1.msra.mxu0 0.0
    %284 = vmatprep.mubr.f32.mxu0 0.0
    %285 = vmatmul.mubr.f32.gmra.mrb[0].mxu0 %v29
    %v286 = vpop.f32.mrb[0].mxu0
    %v287 = vadd.f32 %v201, %v286
    %v288 = vpop.f32.mrb[0].mxu0
    %289 = vdwg.mxu0
    %v290 = vsub.f32 %v287, %v30
    %v291 = vld [vmem:[#allocation2] sm:$0x1]
    %v292 = vmul.f32 %v290, %v290
    %293 = vadd.xlane.f32.xlu0 %v292
    %v294 = vpop.xlane.xlu0 %293
    %v295 = vrot.slane %v294, 4
    %v296 = vadd.f32 %v294, %v295
    %v297 = vrot.slane %v296, 2
    %v298 = vadd.f32 %v296, %v297
    %v299 = vrot.slane %v298, 1
    %v300 = vadd.f32 %v298, %v299
    %s301 = vtos %v300
    %v302 = vstv %s301
    %v303 = vadd.f32 %v291, %v302
    %vm304 = vcmask 0
    %305 = vst.msk [vmem:[#allocation2] sm:$0x1] %vm304, %v303
    %v306 = vld [vmem:[#allocation3] sm:$0x1]
    %v307 = vmul.f32 %v117, %v117
    %308 = vadd.xlane.f32.xlu0 %v307
    %v309 = vpop.xlane.xlu0 %308
    %v310 = vrot.slane %v309, 4
    %v311 = vadd.f32 %v309, %v310
    %v312 = vrot.slane %v311, 2
    %v313 = vadd.f32 %v311, %v312
    %v314 = vrot.slane %v313, 1
    %v315 = vadd.f32 %v313, %v314
    %s316 = vtos %v315
    %v317 = vstv %s316
    %v318 = vadd.f32 %v306, %v317
    %319 = vst.msk [vmem:[#allocation3] sm:$0x1] %vm304, %v318
    %v320 = vld [vmem:[#allocation4] sm:$0x1]
    %v321 = vmul.f32 %v201, %v201
    %322 = vadd.xlane.f32.xlu0 %v321
    %v323 = vpop.xlane.xlu0 %322
    %v324 = vrot.slane %v323, 4
    %v325 = vadd.f32 %v323, %v324
    %v326 = vrot.slane %v325, 2
    %v327 = vadd.f32 %v325, %v326
    %v328 = vrot.slane %v327, 1
    %v329 = vadd.f32 %v327, %v328
    %s330 = vtos %v329
    %v331 = vstv %s330
    %v332 = vadd.f32 %v320, %v331
    %333 = vst.msk [vmem:[#allocation4] sm:$0x1] %vm304, %v332
    // Predicated region
    $region26: #{_lambda_.3} parent=1 // pred_check
      %p334 = pneg %p21
    $region27: #{_lambda_.3} parent=1 // pred_check_branch
      %336 = sbr.rel (%p334) target = $region29
    $region28: #{_lambda_.3} parent=1 // pred_region
      %v337 = vld [vmem:[#allocation2] sm:$0x1]
      %v338 = vrcp.pop 1024.0
      %v339 = vmul.f32 %v337, %v338
      %v340 = vld [vmem:[#allocation3] sm:$0x1]
      %v341 = vmul.f32 %v340, 0.5
      %v342 = vmul.f32 %v341, %v338
      %v343 = vmul.f32 %v342, 0.1
      %v344 = vadd.f32 %v339, %v343
      %v345 = vld [vmem:[#allocation4] sm:$0x1]
      %v346 = vrcp.pop 8.0
      %v347 = vmul.f32 %v345, %v346
      %v348 = vmul.f32 %v347, 0.01
      %v349 = vadd.f32 %v344, %v348
      %350 = vst.msk [vmem:[#allocation5] sm:$0x1] %vm304, %v349
    $region29: #{_lambda_.3} parent=1 // pred_fallthru
      _
    // Predicated region
    $region30: #{_lambda_.3} parent=1 // pred_check
      _
    $region31: #{_lambda_.3} parent=1 // pred_check_branch
      %352 = sbr.rel (0) target = $region33
    $region32: #{_lambda_.3} parent=1 // pred_region
      %s354 = ssub.s32 16, 16
      %355 = vsyncadd [#allocation6], %s354
      %s357 = sshll.u32 [#allocation5], 4
      %s358 = int_to_ptr.vmem [resolvable:$true] %s357
      %360 = dma.vmem_to_hbm [thread:$0]  %s358, 16, %s5, [#allocation6]
    $region33: #{_lambda_.3} parent=1 // pred_fallthru
      _
    // Predicated region
    $region34: #{_lambda_.3} parent=1 // pred_check
      _
    $region35: #{_lambda_.3} parent=1 // pred_check_branch
      %362 = sbr.rel (0) target = $region37
    $region36: #{_lambda_.3} parent=1 // pred_region
      %363 = dma.done [#allocation6], 16
    $region37: #{_lambda_.3} parent=1 // pred_fallthru
      _
    %364 = vsyncpa [#allocation6], 1

// kernel: _lambda_.2
$region0: #{_lambda_.2}
  #allocation0 [shape = 'u32[]', space=smem, size = 0x4, offset = 0x4, fixed_abs, tag = 'smem constant byte address 0x4 - core index']
  #allocation1 [shape = 'u32[144,128]{1,0:T(1,128)}', space=vmem, size = 0x12000, scoped, tag = 'internal scratch']
  #allocation2 [shape = 'f32[8,128]{1,0:T(8,128)}', space=vmem, size = 0x1000, scoped, tag = 'scratch operand']
  #allocation3 [shape = 'f32[8,128]{1,0:T(8,128)}', space=vmem, size = 0x1000, scoped, tag = 'scratch operand']
  %s0 = inlined_call_operand.vmem [shape: bf16[8,1024], index: 0, kind: input, shape index: {}]
  %s1 = inlined_call_operand.vmem [shape: bf16[8,1024], index: 1, kind: input, shape index: {}]
  %s2 = inlined_call_operand.vmem [shape: bf16[1024,128], index: 2, kind: input, shape index: {}]
  %s3 = inlined_call_operand.vmem [shape: f32[1,128], index: 3, kind: input, shape index: {}, may-alias: {3,5,7}]
  %s4 = inlined_call_operand.hbm [shape: bf16[128,128], index: 4, kind: input, shape index: {}]
  %s5 = inlined_call_operand.vmem [shape: f32[1,128], index: 5, kind: input, shape index: {}, may-alias: {3,5,7}]
  %s6 = inlined_call_operand.vmem [shape: bf16[128,128], index: 6, kind: input, shape index: {}]
  %s7 = inlined_call_operand.vmem [shape: f32[1,128], index: 7, kind: input, shape index: {}, may-alias: {3,5,7}]
  %s8 = inlined_call_operand.vmem [shape: f32[8,128], index: 8, kind: output, shape index: {0}]
  %s9 = inlined_call_operand.vmem [shape: f32[8,128], index: 9, kind: output, shape index: {1}]
  %10 = xla_tuple %s8, %s9
  %s11 = sld [smem:[#allocation0]]
  $region62: #{_lambda_.2} parent=0
    _
  %s13 = ssub.s32 1, %s11
  %s14 = scalar_select 0, %s13, %s11
  $region1: #{_lambda_.2} parent=0
    #allocation4 [shape = 'u8[32768]{0}', space=vmem, size = 0x8000, scoped, tag = 'input window, operand 4, single buffered']
    #allocation5 [shape = 's32[1]{0}', space=sflag, size = 0x4, scoped, tag = 'scoped memory for _lambda_.2']
    %15 = vsyncpa [#allocation5], 0
    // Predicated region
    $region2: #{_lambda_.2} parent=1 // pred_check
      _
    $region3: #{_lambda_.2} parent=1 // pred_check_branch
      %17 = sbr.rel (0) target = $region5
    $region4: #{_lambda_.2} parent=1 // pred_region
      _
    $region5: #{_lambda_.2} parent=1 // pred_fallthru
      _
    // Predicated region
    $region6: #{_lambda_.2} parent=1 // pred_check
      _
    $region7: #{_lambda_.2} parent=1 // pred_check_branch
      %19 = sbr.rel (0) target = $region9
    $region8: #{_lambda_.2} parent=1 // pred_region
      _
    $region9: #{_lambda_.2} parent=1 // pred_fallthru
      _
    // Predicated region
    $region10: #{_lambda_.2} parent=1 // pred_check
      _
    $region11: #{_lambda_.2} parent=1 // pred_check_branch
      %21 = sbr.rel (0) target = $region13
    $region12: #{_lambda_.2} parent=1 // pred_region
      _
    $region13: #{_lambda_.2} parent=1 // pred_fallthru
      _
    // Predicated region
    $region14: #{_lambda_.2} parent=1 // pred_check
      _
    $region15: #{_lambda_.2} parent=1 // pred_check_branch
      %23 = sbr.rel (0) target = $region17
    $region16: #{_lambda_.2} parent=1 // pred_region
      _
    $region17: #{_lambda_.2} parent=1 // pred_fallthru
      _
    // Predicated region
    $region18: #{_lambda_.2} parent=1 // pred_check
      _
    $region19: #{_lambda_.2} parent=1 // pred_check_branch
      %25 = sbr.rel (0) target = $region21
    $region20: #{_lambda_.2} parent=1 // pred_region
      %s27 = ssub.s32 1024, 1024
      %28 = vsyncadd [#allocation5], %s27
      %s29 = sshll.u32 [#allocation4], 4
      %s30 = int_to_ptr.vmem [resolvable:$true] %s29
      %35 = dma.hbm_to_vmem [thread:$0]  %s4, 1024, %s30, [#allocation5], 64, 64, 4
    $region21: #{_lambda_.2} parent=1 // pred_fallthru
      _
    // Predicated region
    $region22: #{_lambda_.2} parent=1 // pred_check
      _
    $region23: #{_lambda_.2} parent=1 // pred_check_branch
      %37 = sbr.rel (0) target = $region25
    $region24: #{_lambda_.2} parent=1 // pred_region
      _
    $region25: #{_lambda_.2} parent=1 // pred_fallthru
      _
    // Predicated region
    $region26: #{_lambda_.2} parent=1 // pred_check
      _
    $region27: #{_lambda_.2} parent=1 // pred_check_branch
      %39 = sbr.rel (0) target = $region29
    $region28: #{_lambda_.2} parent=1 // pred_region
      _
    $region29: #{_lambda_.2} parent=1 // pred_fallthru
      _
    // Predicated region
    $region30: #{_lambda_.2} parent=1 // pred_check
      _
    $region31: #{_lambda_.2} parent=1 // pred_check_branch
      %41 = sbr.rel (0) target = $region33
    $region32: #{_lambda_.2} parent=1 // pred_region
      _
    $region33: #{_lambda_.2} parent=1 // pred_fallthru
      _
    // Predicated region
    $region34: #{_lambda_.2} parent=1 // pred_check
      _
    $region35: #{_lambda_.2} parent=1 // pred_check_branch
      %43 = sbr.rel (0) target = $region37
    $region36: #{_lambda_.2} parent=1 // pred_region
      %44 = dma.done [#allocation5], 1024
    $region37: #{_lambda_.2} parent=1 // pred_fallthru
      _
    %p46 = scmp.eq.s32.totalorder 0, 0
    // Predicated region
    $region38: #{_lambda_.2} parent=1 // pred_check
      %p47 = pneg %p46
    $region39: #{_lambda_.2} parent=1 // pred_check_branch
      %49 = sbr.rel (%p47) target = $region41
    $region40: #{_lambda_.2} parent=1 // pred_region
      %50 = vst [vmem:[#allocation2] sm:$0xff] 0.0
      %51 = vst [vmem:[#allocation3] sm:$0xff] 0.0
    $region41: #{_lambda_.2} parent=1 // pred_fallthru
      _
    %v52 = vld [vmem:[#allocation2] sm:$0xff]
    %v53 = vld [vmem:[%s0] sm:$0xff]
    %v54 = vld [vmem:[%s0 + $0x8] sm:$0xff]
    %v55 = vld [vmem:[%s0 + $0x10] sm:$0xff]
    %v56 = vld [vmem:[%s0 + $0x18] sm:$0xff]
    %v57 = vld [vmem:[%s2] sm:$0xf]
    %v58 = vld [vmem:[%s2 + $0x4] sm:$0xf]
    %v59 = vld [vmem:[%s2 + $0x8] sm:$0xf]
    %v60 = vld [vmem:[%s2 + $0xc] sm:$0xf]
    %v61 = vld [vmem:[%s2 + $0x10] sm:$0xf]
    %v62 = vld [vmem:[%s2 + $0x14] sm:$0xf]
    %v63 = vld [vmem:[%s2 + $0x18] sm:$0xf]
    %v64 = vld [vmem:[%s2 + $0x1c] sm:$0xf]
    %v65 = vld [vmem:[%s2 + $0x20] sm:$0xf]
    %v66 = vld [vmem:[%s2 + $0x24] sm:$0xf]
    %v67 = vld [vmem:[%s2 + $0x28] sm:$0xf]
    %v68 = vld [vmem:[%s2 + $0x2c] sm:$0xf]
    %v69 = vld [vmem:[%s2 + $0x30] sm:$0xf]
    %v70 = vld [vmem:[%s2 + $0x34] sm:$0xf]
    %v71 = vld [vmem:[%s2 + $0x38] sm:$0xf]
    %v72 = vld [vmem:[%s2 + $0x3c] sm:$0xf]
    %v73 = vld [vmem:[%s2 + $0x40] sm:$0xf]
    %v74 = vld [vmem:[%s2 + $0x44] sm:$0xf]
    %v75 = vld [vmem:[%s2 + $0x48] sm:$0xf]
    %v76 = vld [vmem:[%s2 + $0x4c] sm:$0xf]
    %v77 = vld [vmem:[%s2 + $0x50] sm:$0xf]
    %v78 = vld [vmem:[%s2 + $0x54] sm:$0xf]
    %v79 = vld [vmem:[%s2 + $0x58] sm:$0xf]
    %v80 = vld [vmem:[%s2 + $0x5c] sm:$0xf]
    %v81 = vld [vmem:[%s2 + $0x60] sm:$0xf]
    %v82 = vld [vmem:[%s2 + $0x64] sm:$0xf]
    %v83 = vld [vmem:[%s2 + $0x68] sm:$0xf]
    %v84 = vld [vmem:[%s2 + $0x6c] sm:$0xf]
    %v85 = vld [vmem:[%s2 + $0x70] sm:$0xf]
    %v86 = vld [vmem:[%s2 + $0x74] sm:$0xf]
    %v87 = vld [vmem:[%s2 + $0x78] sm:$0xf]
    %v88 = vld [vmem:[%s2 + $0x7c] sm:$0xf]
    %v89 = vld [vmem:[%s2 + $0x80] sm:$0xf]
    %v90 = vld [vmem:[%s2 + $0x84] sm:$0xf]
    %v91 = vld [vmem:[%s2 + $0x88] sm:$0xf]
    %v92 = vld [vmem:[%s2 + $0x8c] sm:$0xf]
    %v93 = vld [vmem:[%s2 + $0x90] sm:$0xf]
    %v94 = vld [vmem:[%s2 + $0x94] sm:$0xf]
    %v95 = vld [vmem:[%s2 + $0x98] sm:$0xf]
    %v96 = vld [vmem:[%s2 + $0x9c] sm:$0xf]
    %v97 = vld [vmem:[%s2 + $0xa0] sm:$0xf]
    %v98 = vld [vmem:[%s2 + $0xa4] sm:$0xf]
    %v99 = vld [vmem:[%s2 + $0xa8] sm:$0xf]
    %v100 = vld [vmem:[%s2 + $0xac] sm:$0xf]
    %v101 = vld [vmem:[%s2 + $0xb0] sm:$0xf]
    %v102 = vld [vmem:[%s2 + $0xb4] sm:$0xf]
    %v103 = vld [vmem:[%s2 + $0xb8] sm:$0xf]
    %v104 = vld [vmem:[%s2 + $0xbc] sm:$0xf]
    %v105 = vld [vmem:[%s2 + $0xc0] sm:$0xf]
    %v106 = vld [vmem:[%s2 + $0xc4] sm:$0xf]
    %v107 = vld [vmem:[%s2 + $0xc8] sm:$0xf]
    %v108 = vld [vmem:[%s2 + $0xcc] sm:$0xf]
    %v109 = vld [vmem:[%s2 + $0xd0] sm:$0xf]
    %v110 = vld [vmem:[%s2 + $0xd4] sm:$0xf]
    %v111 = vld [vmem:[%s2 + $0xd8] sm:$0xf]
    %v112 = vld [vmem:[%s2 + $0xdc] sm:$0xf]
    %v113 = vld [vmem:[%s2 + $0xe0] sm:$0xf]
    %v114 = vld [vmem:[%s2 + $0xe4] sm:$0xf]
    %v115 = vld [vmem:[%s2 + $0xe8] sm:$0xf]
    %v116 = vld [vmem:[%s2 + $0xec] sm:$0xf]
    %v117 = vld [vmem:[%s2 + $0xf0] sm:$0xf]
    %v118 = vld [vmem:[%s2 + $0xf4] sm:$0xf]
    %v119 = vld [vmem:[%s2 + $0xf8] sm:$0xf]
    %v120 = vld [vmem:[%s2 + $0xfc] sm:$0xf]
    %v121 = vld [vmem:[%s2 + $0x100] sm:$0xf]
    %v122 = vld [vmem:[%s2 + $0x104] sm:$0xf]
    %v123 = vld [vmem:[%s2 + $0x108] sm:$0xf]
    %v124 = vld [vmem:[%s2 + $0x10c] sm:$0xf]
    %v125 = vld [vmem:[%s2 + $0x110] sm:$0xf]
    %v126 = vld [vmem:[%s2 + $0x114] sm:$0xf]
    %v127 = vld [vmem:[%s2 + $0x118] sm:$0xf]
    %v128 = vld [vmem:[%s2 + $0x11c] sm:$0xf]
    %v129 = vld [vmem:[%s2 + $0x120] sm:$0xf]
    %v130 = vld [vmem:[%s2 + $0x124] sm:$0xf]
    %v131 = vld [vmem:[%s2 + $0x128] sm:$0xf]
    %v132 = vld [vmem:[%s2 + $0x12c] sm:$0xf]
    %v133 = vld [vmem:[%s2 + $0x130] sm:$0xf]
    %v134 = vld [vmem:[%s2 + $0x134] sm:$0xf]
    %v135 = vld [vmem:[%s2 + $0x138] sm:$0xf]
    %v136 = vld [vmem:[%s2 + $0x13c] sm:$0xf]
    %v137 = vld [vmem:[%s2 + $0x140] sm:$0xf]
    %v138 = vld [vmem:[%s2 + $0x144] sm:$0xf]
    %v139 = vld [vmem:[%s2 + $0x148] sm:$0xf]
    %v140 = vld [vmem:[%s2 + $0x14c] sm:$0xf]
    %v141 = vld [vmem:[%s2 + $0x150] sm:$0xf]
    %v142 = vld [vmem:[%s2 + $0x154] sm:$0xf]
    %v143 = vld [vmem:[%s2 + $0x158] sm:$0xf]
    %v144 = vld [vmem:[%s2 + $0x15c] sm:$0xf]
    %v145 = vld [vmem:[%s2 + $0x160] sm:$0xf]
    %v146 = vld [vmem:[%s2 + $0x164] sm:$0xf]
    %v147 = vld [vmem:[%s2 + $0x168] sm:$0xf]
    %v148 = vld [vmem:[%s2 + $0x16c] sm:$0xf]
    %v149 = vld [vmem:[%s2 + $0x170] sm:$0xf]
    %v150 = vld [vmem:[%s2 + $0x174] sm:$0xf]
    %v151 = vld [vmem:[%s2 + $0x178] sm:$0xf]
    %v152 = vld [vmem:[%s2 + $0x17c] sm:$0xf]
    %v153 = vld [vmem:[%s2 + $0x180] sm:$0xf]
    %v154 = vld [vmem:[%s2 + $0x184] sm:$0xf]
    %v155 = vld [vmem:[%s2 + $0x188] sm:$0xf]
    %v156 = vld [vmem:[%s2 + $0x18c] sm:$0xf]
    %v157 = vld [vmem:[%s2 + $0x190] sm:$0xf]
    %v158 = vld [vmem:[%s2 + $0x194] sm:$0xf]
    %v159 = vld [vmem:[%s2 + $0x198] sm:$0xf]
    %v160 = vld [vmem:[%s2 + $0x19c] sm:$0xf]
    %v161 = vld [vmem:[%s2 + $0x1a0] sm:$0xf]
    %v162 = vld [vmem:[%s2 + $0x1a4] sm:$0xf]
    %v163 = vld [vmem:[%s2 + $0x1a8] sm:$0xf]
    %v164 = vld [vmem:[%s2 + $0x1ac] sm:$0xf]
    %v165 = vld [vmem:[%s2 + $0x1b0] sm:$0xf]
    %v166 = vld [vmem:[%s2 + $0x1b4] sm:$0xf]
    %v167 = vld [vmem:[%s2 + $0x1b8] sm:$0xf]
    %v168 = vld [vmem:[%s2 + $0x1bc] sm:$0xf]
    %v169 = vld [vmem:[%s2 + $0x1c0] sm:$0xf]
    %v170 = vld [vmem:[%s2 + $0x1c4] sm:$0xf]
    %v171 = vld [vmem:[%s2 + $0x1c8] sm:$0xf]
    %v172 = vld [vmem:[%s2 + $0x1cc] sm:$0xf]
    %v173 = vld [vmem:[%s2 + $0x1d0] sm:$0xf]
    %v174 = vld [vmem:[%s2 + $0x1d4] sm:$0xf]
    %v175 = vld [vmem:[%s2 + $0x1d8] sm:$0xf]
    %v176 = vld [vmem:[%s2 + $0x1dc] sm:$0xf]
    %v177 = vld [vmem:[%s2 + $0x1e0] sm:$0xf]
    %v178 = vld [vmem:[%s2 + $0x1e4] sm:$0xf]
    %v179 = vld [vmem:[%s2 + $0x1e8] sm:$0xf]
    %v180 = vld [vmem:[%s2 + $0x1ec] sm:$0xf]
    %v181 = vld [vmem:[%s2 + $0x1f0] sm:$0xf]
    %v182 = vld [vmem:[%s2 + $0x1f4] sm:$0xf]
    %v183 = vld [vmem:[%s2 + $0x1f8] sm:$0xf]
    %v184 = vld [vmem:[%s2 + $0x1fc] sm:$0xf]
    %v189 = vunpack.c.l.b16 %v53
    %v190 = vunpack.c.h.b16 %v53
    %v191 = vunpack.c.l.b16 %v54
    %v192 = vunpack.c.h.b16 %v54
    %v193 = vunpack.c.l.b16 %v55
    %v194 = vunpack.c.h.b16 %v55
    %v195 = vunpack.c.l.b16 %v56
    %v196 = vunpack.c.h.b16 %v56
    %v197 = vpack.c.b16 %v189, %v189
    %v198 = vpack.c.b16 %v190, %v190
    %v199 = vpack.c.b16 %v191, %v191
    %v200 = vpack.c.b16 %v192, %v192
    %v201 = vpack.c.b16 %v193, %v193
    %v202 = vpack.c.b16 %v194, %v194
    %v203 = vpack.c.b16 %v195, %v195
    %v204 = vpack.c.b16 %v196, %v196
    %v341 = vunpack.c.l.b16 %v57
    %v342 = vunpack.c.l.b16 %v58
    %v343 = vunpack.c.l.b16 %v59
    %v344 = vunpack.c.l.b16 %v60
    %v345 = vunpack.c.l.b16 %v61
    %v346 = vunpack.c.l.b16 %v62
    %v347 = vunpack.c.l.b16 %v63
    %v348 = vunpack.c.l.b16 %v64
    %v349 = vunpack.c.l.b16 %v65
    %v350 = vunpack.c.l.b16 %v66
    %v351 = vunpack.c.l.b16 %v67
    %v352 = vunpack.c.l.b16 %v68
    %v353 = vunpack.c.l.b16 %v69
    %v354 = vunpack.c.l.b16 %v70
    %v355 = vunpack.c.l.b16 %v71
    %v356 = vunpack.c.l.b16 %v72
    %v357 = vunpack.c.l.b16 %v73
    %v358 = vunpack.c.l.b16 %v74
    %v359 = vunpack.c.l.b16 %v75
    %v360 = vunpack.c.l.b16 %v76
    %v361 = vunpack.c.l.b16 %v77
    %v362 = vunpack.c.l.b16 %v78
    %v363 = vunpack.c.l.b16 %v79
    %v364 = vunpack.c.l.b16 %v80
    %v365 = vunpack.c.l.b16 %v81
    %v366 = vunpack.c.l.b16 %v82
    %v367 = vunpack.c.l.b16 %v83
    %v368 = vunpack.c.l.b16 %v84
    %v369 = vunpack.c.l.b16 %v85
    %v370 = vunpack.c.l.b16 %v86
    %v371 = vunpack.c.l.b16 %v87
    %v372 = vunpack.c.l.b16 %v88
    %v373 = vunpack.c.l.b16 %v89
    %v374 = vunpack.c.l.b16 %v90
    %v375 = vunpack.c.l.b16 %v91
    %v376 = vunpack.c.l.b16 %v92
    %v377 = vunpack.c.l.b16 %v93
    %v378 = vunpack.c.l.b16 %v94
    %v379 = vunpack.c.l.b16 %v95
    %v380 = vunpack.c.l.b16 %v96
    %v381 = vunpack.c.l.b16 %v97
    %v382 = vunpack.c.l.b16 %v98
    %v383 = vunpack.c.l.b16 %v99
    %v384 = vunpack.c.l.b16 %v100
    %v385 = vunpack.c.l.b16 %v101
    %v386 = vunpack.c.l.b16 %v102
    %v387 = vunpack.c.l.b16 %v103
    %v388 = vunpack.c.l.b16 %v104
    %v389 = vunpack.c.l.b16 %v105
    %v390 = vunpack.c.l.b16 %v106
    %v391 = vunpack.c.l.b16 %v107
    %v392 = vunpack.c.l.b16 %v108
    %v393 = vunpack.c.l.b16 %v109
    %v394 = vunpack.c.l.b16 %v110
    %v395 = vunpack.c.l.b16 %v111
    %v396 = vunpack.c.l.b16 %v112
    %v397 = vunpack.c.l.b16 %v113
    %v398 = vunpack.c.l.b16 %v114
    %v399 = vunpack.c.l.b16 %v115
    %v400 = vunpack.c.l.b16 %v116
    %v401 = vunpack.c.l.b16 %v117
    %v402 = vunpack.c.l.b16 %v118
    %v403 = vunpack.c.l.b16 %v119
    %v404 = vunpack.c.l.b16 %v120
    %v405 = vunpack.c.l.b16 %v121
    %v406 = vunpack.c.l.b16 %v122
    %v407 = vunpack.c.l.b16 %v123
    %v408 = vunpack.c.l.b16 %v124
    %v409 = vunpack.c.l.b16 %v125
    %v410 = vunpack.c.l.b16 %v126
    %v411 = vunpack.c.l.b16 %v127
    %v412 = vunpack.c.l.b16 %v128
    %v413 = vunpack.c.l.b16 %v129
    %v414 = vunpack.c.l.b16 %v130
    %v415 = vunpack.c.l.b16 %v131
    %v416 = vunpack.c.l.b16 %v132
    %v417 = vunpack.c.l.b16 %v133
    %v418 = vunpack.c.l.b16 %v134
    %v419 = vunpack.c.l.b16 %v135
    %v420 = vunpack.c.l.b16 %v136
    %v421 = vunpack.c.l.b16 %v137
    %v422 = vunpack.c.l.b16 %v138
    %v423 = vunpack.c.l.b16 %v139
    %v424 = vunpack.c.l.b16 %v140
    %v425 = vunpack.c.l.b16 %v141
    %v426 = vunpack.c.l.b16 %v142
    %v427 = vunpack.c.l.b16 %v143
    %v428 = vunpack.c.l.b16 %v144
    %v429 = vunpack.c.l.b16 %v145
    %v430 = vunpack.c.l.b16 %v146
    %v431 = vunpack.c.l.b16 %v147
    %v432 = vunpack.c.l.b16 %v148
    %v433 = vunpack.c.l.b16 %v149
    %v434 = vunpack.c.l.b16 %v150
    %v435 = vunpack.c.l.b16 %v151
    %v436 = vunpack.c.l.b16 %v152
    %v437 = vunpack.c.l.b16 %v153
    %v438 = vunpack.c.l.b16 %v154
    %v439 = vunpack.c.l.b16 %v155
    %v440 = vunpack.c.l.b16 %v156
    %v441 = vunpack.c.l.b16 %v157
    %v442 = vunpack.c.l.b16 %v158
    %v443 = vunpack.c.l.b16 %v159
    %v444 = vunpack.c.l.b16 %v160
    %v445 = vunpack.c.l.b16 %v161
    %v446 = vunpack.c.l.b16 %v162
    %v447 = vunpack.c.l.b16 %v163
    %v448 = vunpack.c.l.b16 %v164
    %v449 = vunpack.c.l.b16 %v165
    %v450 = vunpack.c.l.b16 %v166
    %v451 = vunpack.c.l.b16 %v167
    %v452 = vunpack.c.l.b16 %v168
    %v453 = vunpack.c.l.b16 %v169
    %v454 = vunpack.c.l.b16 %v170
    %v455 = vunpack.c.l.b16 %v171
    %v456 = vunpack.c.l.b16 %v172
    %v457 = vunpack.c.l.b16 %v173
    %v458 = vunpack.c.l.b16 %v174
    %v459 = vunpack.c.l.b16 %v175
    %v460 = vunpack.c.l.b16 %v176
    %v461 = vunpack.c.l.b16 %v177
    %v462 = vunpack.c.l.b16 %v178
    %v463 = vunpack.c.l.b16 %v179
    %v464 = vunpack.c.l.b16 %v180
    %v465 = vunpack.c.l.b16 %v181
    %v466 = vunpack.c.l.b16 %v182
    %v467 = vunpack.c.l.b16 %v183
    %v468 = vunpack.c.l.b16 %v184
    %v469 = vpack.c.b16 %v342, %v341
    %v470 = vpack.c.b16 %v344, %v343
    %v471 = vpack.c.b16 %v346, %v345
    %v472 = vpack.c.b16 %v348, %v347
    %v473 = vpack.c.b16 %v350, %v349
    %v474 = vpack.c.b16 %v352, %v351
    %v475 = vpack.c.b16 %v354, %v353
    %v476 = vpack.c.b16 %v356, %v355
    %v477 = vpack.c.b16 %v358, %v357
    %v478 = vpack.c.b16 %v360, %v359
    %v479 = vpack.c.b16 %v362, %v361
    %v480 = vpack.c.b16 %v364, %v363
    %v481 = vpack.c.b16 %v366, %v365
    %v482 = vpack.c.b16 %v368, %v367
    %v483 = vpack.c.b16 %v370, %v369
    %v484 = vpack.c.b16 %v372, %v371
    %v485 = vpack.c.b16 %v374, %v373
    %v486 = vpack.c.b16 %v376, %v375
    %v487 = vpack.c.b16 %v378, %v377
    %v488 = vpack.c.b16 %v380, %v379
    %v489 = vpack.c.b16 %v382, %v381
    %v490 = vpack.c.b16 %v384, %v383
    %v491 = vpack.c.b16 %v386, %v385
    %v492 = vpack.c.b16 %v388, %v387
    %v493 = vpack.c.b16 %v390, %v389
    %v494 = vpack.c.b16 %v392, %v391
    %v495 = vpack.c.b16 %v394, %v393
    %v496 = vpack.c.b16 %v396, %v395
    %v497 = vpack.c.b16 %v398, %v397
    %v498 = vpack.c.b16 %v400, %v399
    %v499 = vpack.c.b16 %v402, %v401
    %v500 = vpack.c.b16 %v404, %v403
    %v501 = vpack.c.b16 %v406, %v405
    %v502 = vpack.c.b16 %v408, %v407
    %v503 = vpack.c.b16 %v410, %v409
    %v504 = vpack.c.b16 %v412, %v411
    %v505 = vpack.c.b16 %v414, %v413
    %v506 = vpack.c.b16 %v416, %v415
    %v507 = vpack.c.b16 %v418, %v417
    %v508 = vpack.c.b16 %v420, %v419
    %v509 = vpack.c.b16 %v422, %v421
    %v510 = vpack.c.b16 %v424, %v423
    %v511 = vpack.c.b16 %v426, %v425
    %v512 = vpack.c.b16 %v428, %v427
    %v513 = vpack.c.b16 %v430, %v429
    %v514 = vpack.c.b16 %v432, %v431
    %v515 = vpack.c.b16 %v434, %v433
    %v516 = vpack.c.b16 %v436, %v435
    %v517 = vpack.c.b16 %v438, %v437
    %v518 = vpack.c.b16 %v440, %v439
    %v519 = vpack.c.b16 %v442, %v441
    %v520 = vpack.c.b16 %v444, %v443
    %v521 = vpack.c.b16 %v446, %v445
    %v522 = vpack.c.b16 %v448, %v447
    %v523 = vpack.c.b16 %v450, %v449
    %v524 = vpack.c.b16 %v452, %v451
    %v525 = vpack.c.b16 %v454, %v453
    %v526 = vpack.c.b16 %v456, %v455
    %v527 = vpack.c.b16 %v458, %v457
    %v528 = vpack.c.b16 %v460, %v459
    %v529 = vpack.c.b16 %v462, %v461
    %v530 = vpack.c.b16 %v464, %v463
    %v531 = vpack.c.b16 %v466, %v465
    %v532 = vpack.c.b16 %v468, %v467
    %597 = vmatprep.subr.bf16.mxu0 0
    %598 = vmatpush1.bf16.msra.mxu0 %v469
    %599 = vmatprep.subr.bf16.mxu0 0
    %600 = vmatpush1.bf16.msra.mxu0 %v470
    %601 = vmatprep.subr.bf16.mxu0 0
    %602 = vmatpush1.bf16.msra.mxu0 %v471
    %603 = vmatprep.subr.bf16.mxu0 0
    %604 = vmatpush1.bf16.msra.mxu0 %v472
    %605 = vmatprep.subr.bf16.mxu0 0
    %606 = vmatpush1.bf16.msra.mxu0 %v473
    %607 = vmatprep.subr.bf16.mxu0 0
    %608 = vmatpush1.bf16.msra.mxu0 %v474
    %609 = vmatprep.subr.bf16.mxu0 0
    %610 = vmatpush1.bf16.msra.mxu0 %v475
    %611 = vmatprep.subr.bf16.mxu0 0
    %612 = vmatpush1.bf16.msra.mxu0 %v476
    %613 = vmatprep.subr.bf16.mxu0 0
    %614 = vmatpush1.bf16.msra.mxu0 %v477
    %615 = vmatprep.subr.bf16.mxu0 0
    %616 = vmatpush1.bf16.msra.mxu0 %v478
    %617 = vmatprep.subr.bf16.mxu0 0
    %618 = vmatpush1.bf16.msra.mxu0 %v479
    %619 = vmatprep.subr.bf16.mxu0 0
    %620 = vmatpush1.bf16.msra.mxu0 %v480
    %621 = vmatprep.subr.bf16.mxu0 0
    %622 = vmatpush1.bf16.msra.mxu0 %v481
    %623 = vmatprep.subr.bf16.mxu0 0
    %624 = vmatpush1.bf16.msra.mxu0 %v482
    %625 = vmatprep.subr.bf16.mxu0 0
    %626 = vmatpush1.bf16.msra.mxu0 %v483
    %627 = vmatprep.subr.bf16.mxu0 0
    %628 = vmatpush1.bf16.msra.mxu0 %v484
    %629 = vmatprep.mubr.bf16.mxu0 %v198
    %630 = vmatmul.mubr.bf16.gmra.mrb[0].mxu0 %v197
    %v631 = vpop.f32.mrb[0].mxu0
    %v632 = vadd.f32 0.0, %v631
    %v633 = vpop.f32.mrb[0].mxu0
    %v634 = vpop.f32.mrb[0].mxu0
    %v635 = vpop.f32.mrb[0].mxu0
    %636 = vdwg.mxu0
    %637 = vmatprep.subr.bf16.mxu0 0
    %638 = vmatpush1.bf16.msra.mxu0 %v485
    %639 = vmatprep.subr.bf16.mxu0 0
    %640 = vmatpush1.bf16.msra.mxu0 %v486
    %641 = vmatprep.subr.bf16.mxu0 0
    %642 = vmatpush1.bf16.msra.mxu0 %v487
    %643 = vmatprep.subr.bf16.mxu0 0
    %644 = vmatpush1.bf16.msra.mxu0 %v488
    %645 = vmatprep.subr.bf16.mxu0 0
    %646 = vmatpush1.bf16.msra.mxu0 %v489
    %647 = vmatprep.subr.bf16.mxu0 0
    %648 = vmatpush1.bf16.msra.mxu0 %v490
    %649 = vmatprep.subr.bf16.mxu0 0
    %650 = vmatpush1.bf16.msra.mxu0 %v491
    %651 = vmatprep.subr.bf16.mxu0 0
    %652 = vmatpush1.bf16.msra.mxu0 %v492
    %653 = vmatprep.subr.bf16.mxu0 0
    %654 = vmatpush1.bf16.msra.mxu0 %v493
    %655 = vmatprep.subr.bf16.mxu0 0
    %656 = vmatpush1.bf16.msra.mxu0 %v494
    %657 = vmatprep.subr.bf16.mxu0 0
    %658 = vmatpush1.bf16.msra.mxu0 %v495
    %659 = vmatprep.subr.bf16.mxu0 0
    %660 = vmatpush1.bf16.msra.mxu0 %v496
    %661 = vmatprep.subr.bf16.mxu0 0
    %662 = vmatpush1.bf16.msra.mxu0 %v497
    %663 = vmatprep.subr.bf16.mxu0 0
    %664 = vmatpush1.bf16.msra.mxu0 %v498
    %665 = vmatprep.subr.bf16.mxu0 0
    %666 = vmatpush1.bf16.msra.mxu0 %v499
    %667 = vmatprep.subr.bf16.mxu0 0
    %668 = vmatpush1.bf16.msra.mxu0 %v500
    %669 = vmatprep.mubr.bf16.mxu0 %v200
    %670 = vmatmul.mubr.bf16.gmra.mrb[0].mxu0 %v199
    %v671 = vpop.f32.mrb[0].mxu0
    %v672 = vadd.f32 %v632, %v671
    %v673 = vpop.f32.mrb[0].mxu0
    %v674 = vpop.f32.mrb[0].mxu0
    %v675 = vpop.f32.mrb[0].mxu0
    %676 = vdwg.mxu0
    %677 = vmatprep.subr.bf16.mxu0 0
    %678 = vmatpush1.bf16.msra.mxu0 %v501
    %679 = vmatprep.subr.bf16.mxu0 0
    %680 = vmatpush1.bf16.msra.mxu0 %v502
    %681 = vmatprep.subr.bf16.mxu0 0
    %682 = vmatpush1.bf16.msra.mxu0 %v503
    %683 = vmatprep.subr.bf16.mxu0 0
    %684 = vmatpush1.bf16.msra.mxu0 %v504
    %685 = vmatprep.subr.bf16.mxu0 0
    %686 = vmatpush1.bf16.msra.mxu0 %v505
    %687 = vmatprep.subr.bf16.mxu0 0
    %688 = vmatpush1.bf16.msra.mxu0 %v506
    %689 = vmatprep.subr.bf16.mxu0 0
    %690 = vmatpush1.bf16.msra.mxu0 %v507
    %691 = vmatprep.subr.bf16.mxu0 0
    %692 = vmatpush1.bf16.msra.mxu0 %v508
    %693 = vmatprep.subr.bf16.mxu0 0
    %694 = vmatpush1.bf16.msra.mxu0 %v509
    %695 = vmatprep.subr.bf16.mxu0 0
    %696 = vmatpush1.bf16.msra.mxu0 %v510
    %697 = vmatprep.subr.bf16.mxu0 0
    %698 = vmatpush1.bf16.msra.mxu0 %v511
    %699 = vmatprep.subr.bf16.mxu0 0
    %700 = vmatpush1.bf16.msra.mxu0 %v512
    %701 = vmatprep.subr.bf16.mxu0 0
    %702 = vmatpush1.bf16.msra.mxu0 %v513
    %703 = vmatprep.subr.bf16.mxu0 0
    %704 = vmatpush1.bf16.msra.mxu0 %v514
    %705 = vmatprep.subr.bf16.mxu0 0
    %706 = vmatpush1.bf16.msra.mxu0 %v515
    %707 = vmatprep.subr.bf16.mxu0 0
    %708 = vmatpush1.bf16.msra.mxu0 %v516
    %709 = vmatprep.mubr.bf16.mxu0 %v202
    %710 = vmatmul.mubr.bf16.gmra.mrb[0].mxu0 %v201
    %v711 = vpop.f32.mrb[0].mxu0
    %v712 = vadd.f32 %v672, %v711
    %v713 = vpop.f32.mrb[0].mxu0
    %v714 = vpop.f32.mrb[0].mxu0
    %v715 = vpop.f32.mrb[0].mxu0
    %716 = vdwg.mxu0
    %717 = vmatprep.subr.bf16.mxu0 0
    %718 = vmatpush1.bf16.msra.mxu0 %v517
    %719 = vmatprep.subr.bf16.mxu0 0
    %720 = vmatpush1.bf16.msra.mxu0 %v518
    %721 = vmatprep.subr.bf16.mxu0 0
    %722 = vmatpush1.bf16.msra.mxu0 %v519
    %723 = vmatprep.subr.bf16.mxu0 0
    %724 = vmatpush1.bf16.msra.mxu0 %v520
    %725 = vmatprep.subr.bf16.mxu0 0
    %726 = vmatpush1.bf16.msra.mxu0 %v521
    %727 = vmatprep.subr.bf16.mxu0 0
    %728 = vmatpush1.bf16.msra.mxu0 %v522
    %729 = vmatprep.subr.bf16.mxu0 0
    %730 = vmatpush1.bf16.msra.mxu0 %v523
    %731 = vmatprep.subr.bf16.mxu0 0
    %732 = vmatpush1.bf16.msra.mxu0 %v524
    %733 = vmatprep.subr.bf16.mxu0 0
    %734 = vmatpush1.bf16.msra.mxu0 %v525
    %735 = vmatprep.subr.bf16.mxu0 0
    %736 = vmatpush1.bf16.msra.mxu0 %v526
    %737 = vmatprep.subr.bf16.mxu0 0
    %738 = vmatpush1.bf16.msra.mxu0 %v527
    %739 = vmatprep.subr.bf16.mxu0 0
    %740 = vmatpush1.bf16.msra.mxu0 %v528
    %741 = vmatprep.subr.bf16.mxu0 0
    %742 = vmatpush1.bf16.msra.mxu0 %v529
    %743 = vmatprep.subr.bf16.mxu0 0
    %744 = vmatpush1.bf16.msra.mxu0 %v530
    %745 = vmatprep.subr.bf16.mxu0 0
    %746 = vmatpush1.bf16.msra.mxu0 %v531
    %747 = vmatprep.subr.bf16.mxu0 0
    %748 = vmatpush1.bf16.msra.mxu0 %v532
    %749 = vmatprep.mubr.bf16.mxu0 %v204
    %750 = vmatmul.mubr.bf16.gmra.mrb[0].mxu0 %v203
    %v751 = vpop.f32.mrb[0].mxu0
    %v752 = vadd.f32 %v712, %v751
    %v753 = vpop.f32.mrb[0].mxu0
    %v754 = vpop.f32.mrb[0].mxu0
    %v755 = vpop.f32.mrb[0].mxu0
    %756 = vdwg.mxu0
    %v757 = vadd.f32 %v52, %v752
    %758 = vst [vmem:[#allocation2] sm:$0xff] %v757
    %v759 = vld [vmem:[#allocation3] sm:$0xff]
    %v760 = vld [vmem:[%s1] sm:$0xff]
    %v761 = vld [vmem:[%s1 + $0x8] sm:$0xff]
    %v762 = vld [vmem:[%s1 + $0x10] sm:$0xff]
    %v763 = vld [vmem:[%s1 + $0x18] sm:$0xff]
    %v764 = vld [vmem:[%s2] sm:$0xf]
    %v765 = vld [vmem:[%s2 + $0x4] sm:$0xf]
    %v766 = vld [vmem:[%s2 + $0x8] sm:$0xf]
    %v767 = vld [vmem:[%s2 + $0xc] sm:$0xf]
    %v768 = vld [vmem:[%s2 + $0x10] sm:$0xf]
    %v769 = vld [vmem:[%s2 + $0x14] sm:$0xf]
    %v770 = vld [vmem:[%s2 + $0x18] sm:$0xf]
    %v771 = vld [vmem:[%s2 + $0x1c] sm:$0xf]
    %v772 = vld [vmem:[%s2 + $0x20] sm:$0xf]
    %v773 = vld [vmem:[%s2 + $0x24] sm:$0xf]
    %v774 = vld [vmem:[%s2 + $0x28] sm:$0xf]
    %v775 = vld [vmem:[%s2 + $0x2c] sm:$0xf]
    %v776 = vld [vmem:[%s2 + $0x30] sm:$0xf]
    %v777 = vld [vmem:[%s2 + $0x34] sm:$0xf]
    %v778 = vld [vmem:[%s2 + $0x38] sm:$0xf]
    %v779 = vld [vmem:[%s2 + $0x3c] sm:$0xf]
    %v780 = vld [vmem:[%s2 + $0x40] sm:$0xf]
    %v781 = vld [vmem:[%s2 + $0x44] sm:$0xf]
    %v782 = vld [vmem:[%s2 + $0x48] sm:$0xf]
    %v783 = vld [vmem:[%s2 + $0x4c] sm:$0xf]
    %v784 = vld [vmem:[%s2 + $0x50] sm:$0xf]
    %v785 = vld [vmem:[%s2 + $0x54] sm:$0xf]
    %v786 = vld [vmem:[%s2 + $0x58] sm:$0xf]
    %v787 = vld [vmem:[%s2 + $0x5c] sm:$0xf]
    %v788 = vld [vmem:[%s2 + $0x60] sm:$0xf]
    %v789 = vld [vmem:[%s2 + $0x64] sm:$0xf]
    %v790 = vld [vmem:[%s2 + $0x68] sm:$0xf]
    %v791 = vld [vmem:[%s2 + $0x6c] sm:$0xf]
    %v792 = vld [vmem:[%s2 + $0x70] sm:$0xf]
    %v793 = vld [vmem:[%s2 + $0x74] sm:$0xf]
    %v794 = vld [vmem:[%s2 + $0x78] sm:$0xf]
    %v795 = vld [vmem:[%s2 + $0x7c] sm:$0xf]
    %v796 = vld [vmem:[%s2 + $0x80] sm:$0xf]
    %v797 = vld [vmem:[%s2 + $0x84] sm:$0xf]
    %v798 = vld [vmem:[%s2 + $0x88] sm:$0xf]
    %v799 = vld [vmem:[%s2 + $0x8c] sm:$0xf]
    %v800 = vld [vmem:[%s2 + $0x90] sm:$0xf]
    %v801 = vld [vmem:[%s2 + $0x94] sm:$0xf]
    %v802 = vld [vmem:[%s2 + $0x98] sm:$0xf]
    %v803 = vld [vmem:[%s2 + $0x9c] sm:$0xf]
    %v804 = vld [vmem:[%s2 + $0xa0] sm:$0xf]
    %v805 = vld [vmem:[%s2 + $0xa4] sm:$0xf]
    %v806 = vld [vmem:[%s2 + $0xa8] sm:$0xf]
    %v807 = vld [vmem:[%s2 + $0xac] sm:$0xf]
    %v808 = vld [vmem:[%s2 + $0xb0] sm:$0xf]
    %v809 = vld [vmem:[%s2 + $0xb4] sm:$0xf]
    %v810 = vld [vmem:[%s2 + $0xb8] sm:$0xf]
    %v811 = vld [vmem:[%s2 + $0xbc] sm:$0xf]
    %v812 = vld [vmem:[%s2 + $0xc0] sm:$0xf]
    %v813 = vld [vmem:[%s2 + $0xc4] sm:$0xf]
    %v814 = vld [vmem:[%s2 + $0xc8] sm:$0xf]
    %v815 = vld [vmem:[%s2 + $0xcc] sm:$0xf]
    %v816 = vld [vmem:[%s2 + $0xd0] sm:$0xf]
    %v817 = vld [vmem:[%s2 + $0xd4] sm:$0xf]
    %v818 = vld [vmem:[%s2 + $0xd8] sm:$0xf]
    %v819 = vld [vmem:[%s2 + $0xdc] sm:$0xf]
    %v820 = vld [vmem:[%s2 + $0xe0] sm:$0xf]
    %v821 = vld [vmem:[%s2 + $0xe4] sm:$0xf]
    %v822 = vld [vmem:[%s2 + $0xe8] sm:$0xf]
    %v823 = vld [vmem:[%s2 + $0xec] sm:$0xf]
    %v824 = vld [vmem:[%s2 + $0xf0] sm:$0xf]
    %v825 = vld [vmem:[%s2 + $0xf4] sm:$0xf]
    %v826 = vld [vmem:[%s2 + $0xf8] sm:$0xf]
    %v827 = vld [vmem:[%s2 + $0xfc] sm:$0xf]
    %v828 = vld [vmem:[%s2 + $0x100] sm:$0xf]
    %v829 = vld [vmem:[%s2 + $0x104] sm:$0xf]
    %v830 = vld [vmem:[%s2 + $0x108] sm:$0xf]
    %v831 = vld [vmem:[%s2 + $0x10c] sm:$0xf]
    %v832 = vld [vmem:[%s2 + $0x110] sm:$0xf]
    %v833 = vld [vmem:[%s2 + $0x114] sm:$0xf]
    %v834 = vld [vmem:[%s2 + $0x118] sm:$0xf]
    %v835 = vld [vmem:[%s2 + $0x11c] sm:$0xf]
    %v836 = vld [vmem:[%s2 + $0x120] sm:$0xf]
    %v837 = vld [vmem:[%s2 + $0x124] sm:$0xf]
    %v838 = vld [vmem:[%s2 + $0x128] sm:$0xf]
    %v839 = vld [vmem:[%s2 + $0x12c] sm:$0xf]
    %v840 = vld [vmem:[%s2 + $0x130] sm:$0xf]
    %v841 = vld [vmem:[%s2 + $0x134] sm:$0xf]
    %v842 = vld [vmem:[%s2 + $0x138] sm:$0xf]
    %v843 = vld [vmem:[%s2 + $0x13c] sm:$0xf]
    %v844 = vld [vmem:[%s2 + $0x140] sm:$0xf]
    %v845 = vld [vmem:[%s2 + $0x144] sm:$0xf]
    %v846 = vld [vmem:[%s2 + $0x148] sm:$0xf]
    %v847 = vld [vmem:[%s2 + $0x14c] sm:$0xf]
    %v848 = vld [vmem:[%s2 + $0x150] sm:$0xf]
    %v849 = vld [vmem:[%s2 + $0x154] sm:$0xf]
    %v850 = vld [vmem:[%s2 + $0x158] sm:$0xf]
    %v851 = vld [vmem:[%s2 + $0x15c] sm:$0xf]
    %v852 = vld [vmem:[%s2 + $0x160] sm:$0xf]
    %v853 = vld [vmem:[%s2 + $0x164] sm:$0xf]
    %v854 = vld [vmem:[%s2 + $0x168] sm:$0xf]
    %v855 = vld [vmem:[%s2 + $0x16c] sm:$0xf]
    %v856 = vld [vmem:[%s2 + $0x170] sm:$0xf]
    %v857 = vld [vmem:[%s2 + $0x174] sm:$0xf]
    %v858 = vld [vmem:[%s2 + $0x178] sm:$0xf]
    %v859 = vld [vmem:[%s2 + $0x17c] sm:$0xf]
    %v860 = vld [vmem:[%s2 + $0x180] sm:$0xf]
    %v861 = vld [vmem:[%s2 + $0x184] sm:$0xf]
    %v862 = vld [vmem:[%s2 + $0x188] sm:$0xf]
    %v863 = vld [vmem:[%s2 + $0x18c] sm:$0xf]
    %v864 = vld [vmem:[%s2 + $0x190] sm:$0xf]
    %v865 = vld [vmem:[%s2 + $0x194] sm:$0xf]
    %v866 = vld [vmem:[%s2 + $0x198] sm:$0xf]
    %v867 = vld [vmem:[%s2 + $0x19c] sm:$0xf]
    %v868 = vld [vmem:[%s2 + $0x1a0] sm:$0xf]
    %v869 = vld [vmem:[%s2 + $0x1a4] sm:$0xf]
    %v870 = vld [vmem:[%s2 + $0x1a8] sm:$0xf]
    %v871 = vld [vmem:[%s2 + $0x1ac] sm:$0xf]
    %v872 = vld [vmem:[%s2 + $0x1b0] sm:$0xf]
    %v873 = vld [vmem:[%s2 + $0x1b4] sm:$0xf]
    %v874 = vld [vmem:[%s2 + $0x1b8] sm:$0xf]
    %v875 = vld [vmem:[%s2 + $0x1bc] sm:$0xf]
    %v876 = vld [vmem:[%s2 + $0x1c0] sm:$0xf]
    %v877 = vld [vmem:[%s2 + $0x1c4] sm:$0xf]
    %v878 = vld [vmem:[%s2 + $0x1c8] sm:$0xf]
    %v879 = vld [vmem:[%s2 + $0x1cc] sm:$0xf]
    %v880 = vld [vmem:[%s2 + $0x1d0] sm:$0xf]
    %v881 = vld [vmem:[%s2 + $0x1d4] sm:$0xf]
    %v882 = vld [vmem:[%s2 + $0x1d8] sm:$0xf]
    %v883 = vld [vmem:[%s2 + $0x1dc] sm:$0xf]
    %v884 = vld [vmem:[%s2 + $0x1e0] sm:$0xf]
    %v885 = vld [vmem:[%s2 + $0x1e4] sm:$0xf]
    %v886 = vld [vmem:[%s2 + $0x1e8] sm:$0xf]
    %v887 = vld [vmem:[%s2 + $0x1ec] sm:$0xf]
    %v888 = vld [vmem:[%s2 + $0x1f0] sm:$0xf]
    %v889 = vld [vmem:[%s2 + $0x1f4] sm:$0xf]
    %v890 = vld [vmem:[%s2 + $0x1f8] sm:$0xf]
    %v891 = vld [vmem:[%s2 + $0x1fc] sm:$0xf]
    %v896 = vunpack.c.l.b16 %v760
    %v897 = vunpack.c.h.b16 %v760
    %v898 = vunpack.c.l.b16 %v761
    %v899 = vunpack.c.h.b16 %v761
    %v900 = vunpack.c.l.b16 %v762
    %v901 = vunpack.c.h.b16 %v762
    %v902 = vunpack.c.l.b16 %v763
    %v903 = vunpack.c.h.b16 %v763
    %v904 = vpack.c.b16 %v896, %v896
    %v905 = vpack.c.b16 %v897, %v897
    %v906 = vpack.c.b16 %v898, %v898
    %v907 = vpack.c.b16 %v899, %v899
    %v908 = vpack.c.b16 %v900, %v900
    %v909 = vpack.c.b16 %v901, %v901
    %v910 = vpack.c.b16 %v902, %v902
    %v911 = vpack.c.b16 %v903, %v903
    %v1048 = vunpack.c.l.b16 %v764
    %v1049 = vunpack.c.l.b16 %v765
    %v1050 = vunpack.c.l.b16 %v766
    %v1051 = vunpack.c.l.b16 %v767
    %v1052 = vunpack.c.l.b16 %v768
    %v1053 = vunpack.c.l.b16 %v769
    %v1054 = vunpack.c.l.b16 %v770
    %v1055 = vunpack.c.l.b16 %v771
    %v1056 = vunpack.c.l.b16 %v772
    %v1057 = vunpack.c.l.b16 %v773
    %v1058 = vunpack.c.l.b16 %v774
    %v1059 = vunpack.c.l.b16 %v775
    %v1060 = vunpack.c.l.b16 %v776
    %v1061 = vunpack.c.l.b16 %v777
    %v1062 = vunpack.c.l.b16 %v778
    %v1063 = vunpack.c.l.b16 %v779
    %v1064 = vunpack.c.l.b16 %v780
    %v1065 = vunpack.c.l.b16 %v781
    %v1066 = vunpack.c.l.b16 %v782
    %v1067 = vunpack.c.l.b16 %v783
    %v1068 = vunpack.c.l.b16 %v784
    %v1069 = vunpack.c.l.b16 %v785
    %v1070 = vunpack.c.l.b16 %v786
    %v1071 = vunpack.c.l.b16 %v787
    %v1072 = vunpack.c.l.b16 %v788
    %v1073 = vunpack.c.l.b16 %v789
    %v1074 = vunpack.c.l.b16 %v790
    %v1075 = vunpack.c.l.b16 %v791
    %v1076 = vunpack.c.l.b16 %v792
    %v1077 = vunpack.c.l.b16 %v793
    %v1078 = vunpack.c.l.b16 %v794
    %v1079 = vunpack.c.l.b16 %v795
    %v1080 = vunpack.c.l.b16 %v796
    %v1081 = vunpack.c.l.b16 %v797
    %v1082 = vunpack.c.l.b16 %v798
    %v1083 = vunpack.c.l.b16 %v799
    %v1084 = vunpack.c.l.b16 %v800
    %v1085 = vunpack.c.l.b16 %v801
    %v1086 = vunpack.c.l.b16 %v802
    %v1087 = vunpack.c.l.b16 %v803
    %v1088 = vunpack.c.l.b16 %v804
    %v1089 = vunpack.c.l.b16 %v805
    %v1090 = vunpack.c.l.b16 %v806
    %v1091 = vunpack.c.l.b16 %v807
    %v1092 = vunpack.c.l.b16 %v808
    %v1093 = vunpack.c.l.b16 %v809
    %v1094 = vunpack.c.l.b16 %v810
    %v1095 = vunpack.c.l.b16 %v811
    %v1096 = vunpack.c.l.b16 %v812
    %v1097 = vunpack.c.l.b16 %v813
    %v1098 = vunpack.c.l.b16 %v814
    %v1099 = vunpack.c.l.b16 %v815
    %v1100 = vunpack.c.l.b16 %v816
    %v1101 = vunpack.c.l.b16 %v817
    %v1102 = vunpack.c.l.b16 %v818
    %v1103 = vunpack.c.l.b16 %v819
    %v1104 = vunpack.c.l.b16 %v820
    %v1105 = vunpack.c.l.b16 %v821
    %v1106 = vunpack.c.l.b16 %v822
    %v1107 = vunpack.c.l.b16 %v823
    %v1108 = vunpack.c.l.b16 %v824
    %v1109 = vunpack.c.l.b16 %v825
    %v1110 = vunpack.c.l.b16 %v826
    %v1111 = vunpack.c.l.b16 %v827
    %v1112 = vunpack.c.l.b16 %v828
    %v1113 = vunpack.c.l.b16 %v829
    %v1114 = vunpack.c.l.b16 %v830
    %v1115 = vunpack.c.l.b16 %v831
    %v1116 = vunpack.c.l.b16 %v832
    %v1117 = vunpack.c.l.b16 %v833
    %v1118 = vunpack.c.l.b16 %v834
    %v1119 = vunpack.c.l.b16 %v835
    %v1120 = vunpack.c.l.b16 %v836
    %v1121 = vunpack.c.l.b16 %v837
    %v1122 = vunpack.c.l.b16 %v838
    %v1123 = vunpack.c.l.b16 %v839
    %v1124 = vunpack.c.l.b16 %v840
    %v1125 = vunpack.c.l.b16 %v841
    %v1126 = vunpack.c.l.b16 %v842
    %v1127 = vunpack.c.l.b16 %v843
    %v1128 = vunpack.c.l.b16 %v844
    %v1129 = vunpack.c.l.b16 %v845
    %v1130 = vunpack.c.l.b16 %v846
    %v1131 = vunpack.c.l.b16 %v847
    %v1132 = vunpack.c.l.b16 %v848
    %v1133 = vunpack.c.l.b16 %v849
    %v1134 = vunpack.c.l.b16 %v850
    %v1135 = vunpack.c.l.b16 %v851
    %v1136 = vunpack.c.l.b16 %v852
    %v1137 = vunpack.c.l.b16 %v853
    %v1138 = vunpack.c.l.b16 %v854
    %v1139 = vunpack.c.l.b16 %v855
    %v1140 = vunpack.c.l.b16 %v856
    %v1141 = vunpack.c.l.b16 %v857
    %v1142 = vunpack.c.l.b16 %v858
    %v1143 = vunpack.c.l.b16 %v859
    %v1144 = vunpack.c.l.b16 %v860
    %v1145 = vunpack.c.l.b16 %v861
    %v1146 = vunpack.c.l.b16 %v862
    %v1147 = vunpack.c.l.b16 %v863
    %v1148 = vunpack.c.l.b16 %v864
    %v1149 = vunpack.c.l.b16 %v865
    %v1150 = vunpack.c.l.b16 %v866
    %v1151 = vunpack.c.l.b16 %v867
    %v1152 = vunpack.c.l.b16 %v868
    %v1153 = vunpack.c.l.b16 %v869
    %v1154 = vunpack.c.l.b16 %v870
    %v1155 = vunpack.c.l.b16 %v871
    %v1156 = vunpack.c.l.b16 %v872
    %v1157 = vunpack.c.l.b16 %v873
    %v1158 = vunpack.c.l.b16 %v874
    %v1159 = vunpack.c.l.b16 %v875
    %v1160 = vunpack.c.l.b16 %v876
    %v1161 = vunpack.c.l.b16 %v877
    %v1162 = vunpack.c.l.b16 %v878
    %v1163 = vunpack.c.l.b16 %v879
    %v1164 = vunpack.c.l.b16 %v880
    %v1165 = vunpack.c.l.b16 %v881
    %v1166 = vunpack.c.l.b16 %v882
    %v1167 = vunpack.c.l.b16 %v883
    %v1168 = vunpack.c.l.b16 %v884
    %v1169 = vunpack.c.l.b16 %v885
    %v1170 = vunpack.c.l.b16 %v886
    %v1171 = vunpack.c.l.b16 %v887
    %v1172 = vunpack.c.l.b16 %v888
    %v1173 = vunpack.c.l.b16 %v889
    %v1174 = vunpack.c.l.b16 %v890
    %v1175 = vunpack.c.l.b16 %v891
    %v1176 = vpack.c.b16 %v1049, %v1048
    %v1177 = vpack.c.b16 %v1051, %v1050
    %v1178 = vpack.c.b16 %v1053, %v1052
    %v1179 = vpack.c.b16 %v1055, %v1054
    %v1180 = vpack.c.b16 %v1057, %v1056
    %v1181 = vpack.c.b16 %v1059, %v1058
    %v1182 = vpack.c.b16 %v1061, %v1060
    %v1183 = vpack.c.b16 %v1063, %v1062
    %v1184 = vpack.c.b16 %v1065, %v1064
    %v1185 = vpack.c.b16 %v1067, %v1066
    %v1186 = vpack.c.b16 %v1069, %v1068
    %v1187 = vpack.c.b16 %v1071, %v1070
    %v1188 = vpack.c.b16 %v1073, %v1072
    %v1189 = vpack.c.b16 %v1075, %v1074
    %v1190 = vpack.c.b16 %v1077, %v1076
    %v1191 = vpack.c.b16 %v1079, %v1078
    %v1192 = vpack.c.b16 %v1081, %v1080
    %v1193 = vpack.c.b16 %v1083, %v1082
    %v1194 = vpack.c.b16 %v1085, %v1084
    %v1195 = vpack.c.b16 %v1087, %v1086
    %v1196 = vpack.c.b16 %v1089, %v1088
    %v1197 = vpack.c.b16 %v1091, %v1090
    %v1198 = vpack.c.b16 %v1093, %v1092
    %v1199 = vpack.c.b16 %v1095, %v1094
    %v1200 = vpack.c.b16 %v1097, %v1096
    %v1201 = vpack.c.b16 %v1099, %v1098
    %v1202 = vpack.c.b16 %v1101, %v1100
    %v1203 = vpack.c.b16 %v1103, %v1102
    %v1204 = vpack.c.b16 %v1105, %v1104
    %v1205 = vpack.c.b16 %v1107, %v1106
    %v1206 = vpack.c.b16 %v1109, %v1108
    %v1207 = vpack.c.b16 %v1111, %v1110
    %v1208 = vpack.c.b16 %v1113, %v1112
    %v1209 = vpack.c.b16 %v1115, %v1114
    %v1210 = vpack.c.b16 %v1117, %v1116
    %v1211 = vpack.c.b16 %v1119, %v1118
    %v1212 = vpack.c.b16 %v1121, %v1120
    %v1213 = vpack.c.b16 %v1123, %v1122
    %v1214 = vpack.c.b16 %v1125, %v1124
    %v1215 = vpack.c.b16 %v1127, %v1126
    %v1216 = vpack.c.b16 %v1129, %v1128
    %v1217 = vpack.c.b16 %v1131, %v1130
    %v1218 = vpack.c.b16 %v1133, %v1132
    %v1219 = vpack.c.b16 %v1135, %v1134
    %v1220 = vpack.c.b16 %v1137, %v1136
    %v1221 = vpack.c.b16 %v1139, %v1138
    %v1222 = vpack.c.b16 %v1141, %v1140
    %v1223 = vpack.c.b16 %v1143, %v1142
    %v1224 = vpack.c.b16 %v1145, %v1144
    %v1225 = vpack.c.b16 %v1147, %v1146
    %v1226 = vpack.c.b16 %v1149, %v1148
    %v1227 = vpack.c.b16 %v1151, %v1150
    %v1228 = vpack.c.b16 %v1153, %v1152
    %v1229 = vpack.c.b16 %v1155, %v1154
    %v1230 = vpack.c.b16 %v1157, %v1156
    %v1231 = vpack.c.b16 %v1159, %v1158
    %v1232 = vpack.c.b16 %v1161, %v1160
    %v1233 = vpack.c.b16 %v1163, %v1162
    %v1234 = vpack.c.b16 %v1165, %v1164
    %v1235 = vpack.c.b16 %v1167, %v1166
    %v1236 = vpack.c.b16 %v1169, %v1168
    %v1237 = vpack.c.b16 %v1171, %v1170
    %v1238 = vpack.c.b16 %v1173, %v1172
    %v1239 = vpack.c.b16 %v1175, %v1174
    %1304 = vmatprep.subr.bf16.mxu0 0
    %1305 = vmatpush1.bf16.msra.mxu0 %v1176
    %1306 = vmatprep.subr.bf16.mxu0 0
    %1307 = vmatpush1.bf16.msra.mxu0 %v1177
    %1308 = vmatprep.subr.bf16.mxu0 0
    %1309 = vmatpush1.bf16.msra.mxu0 %v1178
    %1310 = vmatprep.subr.bf16.mxu0 0
    %1311 = vmatpush1.bf16.msra.mxu0 %v1179
    %1312 = vmatprep.subr.bf16.mxu0 0
    %1313 = vmatpush1.bf16.msra.mxu0 %v1180
    %1314 = vmatprep.subr.bf16.mxu0 0
    %1315 = vmatpush1.bf16.msra.mxu0 %v1181
    %1316 = vmatprep.subr.bf16.mxu0 0
    %1317 = vmatpush1.bf16.msra.mxu0 %v1182
    %1318 = vmatprep.subr.bf16.mxu0 0
    %1319 = vmatpush1.bf16.msra.mxu0 %v1183
    %1320 = vmatprep.subr.bf16.mxu0 0
    %1321 = vmatpush1.bf16.msra.mxu0 %v1184
    %1322 = vmatprep.subr.bf16.mxu0 0
    %1323 = vmatpush1.bf16.msra.mxu0 %v1185
    %1324 = vmatprep.subr.bf16.mxu0 0
    %1325 = vmatpush1.bf16.msra.mxu0 %v1186
    %1326 = vmatprep.subr.bf16.mxu0 0
    %1327 = vmatpush1.bf16.msra.mxu0 %v1187
    %1328 = vmatprep.subr.bf16.mxu0 0
    %1329 = vmatpush1.bf16.msra.mxu0 %v1188
    %1330 = vmatprep.subr.bf16.mxu0 0
    %1331 = vmatpush1.bf16.msra.mxu0 %v1189
    %1332 = vmatprep.subr.bf16.mxu0 0
    %1333 = vmatpush1.bf16.msra.mxu0 %v1190
    %1334 = vmatprep.subr.bf16.mxu0 0
    %1335 = vmatpush1.bf16.msra.mxu0 %v1191
    %1336 = vmatprep.mubr.bf16.mxu0 %v905
    %1337 = vmatmul.mubr.bf16.gmra.mrb[0].mxu0 %v904
    %v1338 = vpop.f32.mrb[0].mxu0
    %v1339 = vadd.f32 0.0, %v1338
    %v1340 = vpop.f32.mrb[0].mxu0
    %v1341 = vpop.f32.mrb[0].mxu0
    %v1342 = vpop.f32.mrb[0].mxu0
    %1343 = vdwg.mxu0
    %1344 = vmatprep.subr.bf16.mxu0 0
    %1345 = vmatpush1.bf16.msra.mxu0 %v1192
    %1346 = vmatprep.subr.bf16.mxu0 0
    %1347 = vmatpush1.bf16.msra.mxu0 %v1193
    %1348 = vmatprep.subr.bf16.mxu0 0
    %1349 = vmatpush1.bf16.msra.mxu0 %v1194
    %1350 = vmatprep.subr.bf16.mxu0 0
    %1351 = vmatpush1.bf16.msra.mxu0 %v1195
    %1352 = vmatprep.subr.bf16.mxu0 0
    %1353 = vmatpush1.bf16.msra.mxu0 %v1196
    %1354 = vmatprep.subr.bf16.mxu0 0
    %1355 = vmatpush1.bf16.msra.mxu0 %v1197
    %1356 = vmatprep.subr.bf16.mxu0 0
    %1357 = vmatpush1.bf16.msra.mxu0 %v1198
    %1358 = vmatprep.subr.bf16.mxu0 0
    %1359 = vmatpush1.bf16.msra.mxu0 %v1199
    %1360 = vmatprep.subr.bf16.mxu0 0
    %1361 = vmatpush1.bf16.msra.mxu0 %v1200
    %1362 = vmatprep.subr.bf16.mxu0 0
    %1363 = vmatpush1.bf16.msra.mxu0 %v1201
    %1364 = vmatprep.subr.bf16.mxu0 0
    %1365 = vmatpush1.bf16.msra.mxu0 %v1202
    %1366 = vmatprep.subr.bf16.mxu0 0
    %1367 = vmatpush1.bf16.msra.mxu0 %v1203
    %1368 = vmatprep.subr.bf16.mxu0 0
    %1369 = vmatpush1.bf16.msra.mxu0 %v1204
    %1370 = vmatprep.subr.bf16.mxu0 0
    %1371 = vmatpush1.bf16.msra.mxu0 %v1205
    %1372 = vmatprep.subr.bf16.mxu0 0
    %1373 = vmatpush1.bf16.msra.mxu0 %v1206
    %1374 = vmatprep.subr.bf16.mxu0 0
    %1375 = vmatpush1.bf16.msra.mxu0 %v1207
    %1376 = vmatprep.mubr.bf16.mxu0 %v907
    %1377 = vmatmul.mubr.bf16.gmra.mrb[0].mxu0 %v906
    %v1378 = vpop.f32.mrb[0].mxu0
    %v1379 = vadd.f32 %v1339, %v1378
    %v1380 = vpop.f32.mrb[0].mxu0
    %v1381 = vpop.f32.mrb[0].mxu0
    %v1382 = vpop.f32.mrb[0].mxu0
    %1383 = vdwg.mxu0
    %1384 = vmatprep.subr.bf16.mxu0 0
    %1385 = vmatpush1.bf16.msra.mxu0 %v1208
    %1386 = vmatprep.subr.bf16.mxu0 0
    %1387 = vmatpush1.bf16.msra.mxu0 %v1209
    %1388 = vmatprep.subr.bf16.mxu0 0
    %1389 = vmatpush1.bf16.msra.mxu0 %v1210
    %1390 = vmatprep.subr.bf16.mxu0 0
    %1391 = vmatpush1.bf16.msra.mxu0 %v1211
    %1392 = vmatprep.subr.bf16.mxu0 0
    %1393 = vmatpush1.bf16.msra.mxu0 %v1212
    %1394 = vmatprep.subr.bf16.mxu0 0
    %1395 = vmatpush1.bf16.msra.mxu0 %v1213
    %1396 = vmatprep.subr.bf16.mxu0 0
    %1397 = vmatpush1.bf16.msra.mxu0 %v1214
    %1398 = vmatprep.subr.bf16.mxu0 0
    %1399 = vmatpush1.bf16.msra.mxu0 %v1215
    %1400 = vmatprep.subr.bf16.mxu0 0
    %1401 = vmatpush1.bf16.msra.mxu0 %v1216
    %1402 = vmatprep.subr.bf16.mxu0 0
    %1403 = vmatpush1.bf16.msra.mxu0 %v1217
    %1404 = vmatprep.subr.bf16.mxu0 0
    %1405 = vmatpush1.bf16.msra.mxu0 %v1218
    %1406 = vmatprep.subr.bf16.mxu0 0
    %1407 = vmatpush1.bf16.msra.mxu0 %v1219
    %1408 = vmatprep.subr.bf16.mxu0 0
    %1409 = vmatpush1.bf16.msra.mxu0 %v1220
    %1410 = vmatprep.subr.bf16.mxu0 0
    %1411 = vmatpush1.bf16.msra.mxu0 %v1221
    %1412 = vmatprep.subr.bf16.mxu0 0
    %1413 = vmatpush1.bf16.msra.mxu0 %v1222
    %1414 = vmatprep.subr.bf16.mxu0 0
    %1415 = vmatpush1.bf16.msra.mxu0 %v1223
    %1416 = vmatprep.mubr.bf16.mxu0 %v909
    %1417 = vmatmul.mubr.bf16.gmra.mrb[0].mxu0 %v908
    %v1418 = vpop.f32.mrb[0].mxu0
    %v1419 = vadd.f32 %v1379, %v1418
    %v1420 = vpop.f32.mrb[0].mxu0
    %v1421 = vpop.f32.mrb[0].mxu0
    %v1422 = vpop.f32.mrb[0].mxu0
    %1423 = vdwg.mxu0
    %1424 = vmatprep.subr.bf16.mxu0 0
    %1425 = vmatpush1.bf16.msra.mxu0 %v1224
    %1426 = vmatprep.subr.bf16.mxu0 0
    %1427 = vmatpush1.bf16.msra.mxu0 %v1225
    %1428 = vmatprep.subr.bf16.mxu0 0
    %1429 = vmatpush1.bf16.msra.mxu0 %v1226
    %1430 = vmatprep.subr.bf16.mxu0 0
    %1431 = vmatpush1.bf16.msra.mxu0 %v1227
    %1432 = vmatprep.subr.bf16.mxu0 0
    %1433 = vmatpush1.bf16.msra.mxu0 %v1228
    %1434 = vmatprep.subr.bf16.mxu0 0
    %1435 = vmatpush1.bf16.msra.mxu0 %v1229
    %1436 = vmatprep.subr.bf16.mxu0 0
    %1437 = vmatpush1.bf16.msra.mxu0 %v1230
    %1438 = vmatprep.subr.bf16.mxu0 0
    %1439 = vmatpush1.bf16.msra.mxu0 %v1231
    %1440 = vmatprep.subr.bf16.mxu0 0
    %1441 = vmatpush1.bf16.msra.mxu0 %v1232
    %1442 = vmatprep.subr.bf16.mxu0 0
    %1443 = vmatpush1.bf16.msra.mxu0 %v1233
    %1444 = vmatprep.subr.bf16.mxu0 0
    %1445 = vmatpush1.bf16.msra.mxu0 %v1234
    %1446 = vmatprep.subr.bf16.mxu0 0
    %1447 = vmatpush1.bf16.msra.mxu0 %v1235
    %1448 = vmatprep.subr.bf16.mxu0 0
    %1449 = vmatpush1.bf16.msra.mxu0 %v1236
    %1450 = vmatprep.subr.bf16.mxu0 0
    %1451 = vmatpush1.bf16.msra.mxu0 %v1237
    %1452 = vmatprep.subr.bf16.mxu0 0
    %1453 = vmatpush1.bf16.msra.mxu0 %v1238
    %1454 = vmatprep.subr.bf16.mxu0 0
    %1455 = vmatpush1.bf16.msra.mxu0 %v1239
    %1456 = vmatprep.mubr.bf16.mxu0 %v911
    %1457 = vmatmul.mubr.bf16.gmra.mrb[0].mxu0 %v910
    %v1458 = vpop.f32.mrb[0].mxu0
    %v1459 = vadd.f32 %v1419, %v1458
    %v1460 = vpop.f32.mrb[0].mxu0
    %v1461 = vpop.f32.mrb[0].mxu0
    %v1462 = vpop.f32.mrb[0].mxu0
    %1463 = vdwg.mxu0
    %v1464 = vadd.f32 %v759, %v1459
    %1465 = vst [vmem:[#allocation3] sm:$0xff] %v1464
    // Predicated region
    $region42: #{_lambda_.2} parent=1 // pred_check
      %p1466 = pneg %p46
    $region43: #{_lambda_.2} parent=1 // pred_check_branch
      %1468 = sbr.rel (%p1466) target = $region45
    $region44: #{_lambda_.2} parent=1 // pred_region
      %v1469 = vld [vmem:[#allocation2] sm:$0xff]
      %v1470 = vld [vmem:[%s3] sm:$0x1]
      %v1472 = vlaneseq
      %v1473 = vshrl.u32 %v1472, 7
      %v1474 = vsub.s32 0, %v1473
      %v1475 = vrot.slane %v1470, %v1474
      %v1477 = vadd.f32 %v1469, %v1475
      %v1478 = vpack.c.bf16 %v1477, %v1477
      %v1479 = vld [vmem:[#allocation4] sm:$0xf]
      %v1480 = vld [vmem:[#allocation4 + $0x4] sm:$0xf]
      %v1481 = vld [vmem:[#allocation4 + $0x8] sm:$0xf]
      %v1482 = vld [vmem:[#allocation4 + $0xc] sm:$0xf]
      %v1483 = vld [vmem:[#allocation4 + $0x10] sm:$0xf]
      %v1484 = vld [vmem:[#allocation4 + $0x14] sm:$0xf]
      %v1485 = vld [vmem:[#allocation4 + $0x18] sm:$0xf]
      %v1486 = vld [vmem:[#allocation4 + $0x1c] sm:$0xf]
      %v1487 = vld [vmem:[#allocation4 + $0x20] sm:$0xf]
      %v1488 = vld [vmem:[#allocation4 + $0x24] sm:$0xf]
      %v1489 = vld [vmem:[#allocation4 + $0x28] sm:$0xf]
      %v1490 = vld [vmem:[#allocation4 + $0x2c] sm:$0xf]
      %v1491 = vld [vmem:[#allocation4 + $0x30] sm:$0xf]
      %v1492 = vld [vmem:[#allocation4 + $0x34] sm:$0xf]
      %v1493 = vld [vmem:[#allocation4 + $0x38] sm:$0xf]
      %v1494 = vld [vmem:[#allocation4 + $0x3c] sm:$0xf]
      %v1495 = vld [vmem:[%s5] sm:$0x1]
      %v1497 = vlaneseq
      %v1498 = vshrl.u32 %v1497, 7
      %v1499 = vsub.s32 0, %v1498
      %v1500 = vrot.slane %v1495, %v1499
      %v1518 = vunpack.c.l.b16 %v1479
      %v1519 = vunpack.c.l.b16 %v1480
      %v1520 = vunpack.c.l.b16 %v1481
      %v1521 = vunpack.c.l.b16 %v1482
      %v1522 = vunpack.c.l.b16 %v1483
      %v1523 = vunpack.c.l.b16 %v1484
      %v1524 = vunpack.c.l.b16 %v1485
      %v1525 = vunpack.c.l.b16 %v1486
      %v1526 = vunpack.c.l.b16 %v1487
      %v1527 = vunpack.c.l.b16 %v1488
      %v1528 = vunpack.c.l.b16 %v1489
      %v1529 = vunpack.c.l.b16 %v1490
      %v1530 = vunpack.c.l.b16 %v1491
      %v1531 = vunpack.c.l.b16 %v1492
      %v1532 = vunpack.c.l.b16 %v1493
      %v1533 = vunpack.c.l.b16 %v1494
      %v1534 = vpack.c.b16 %v1519, %v1518
      %v1535 = vpack.c.b16 %v1521, %v1520
      %v1536 = vpack.c.b16 %v1523, %v1522
      %v1537 = vpack.c.b16 %v1525, %v1524
      %v1538 = vpack.c.b16 %v1527, %v1526
      %v1539 = vpack.c.b16 %v1529, %v1528
      %v1540 = vpack.c.b16 %v1531, %v1530
      %v1541 = vpack.c.b16 %v1533, %v1532
      %1550 = vmatprep.subr.bf16.mxu0 0
      %1551 = vmatpush1.bf16.msra.mxu0 %v1534
      %1552 = vmatprep.subr.bf16.mxu0 0
      %1553 = vmatpush1.bf16.msra.mxu0 %v1535
      %1554 = vmatprep.subr.bf16.mxu0 0
      %1555 = vmatpush1.bf16.msra.mxu0 %v1536
      %1556 = vmatprep.subr.bf16.mxu0 0
      %1557 = vmatpush1.bf16.msra.mxu0 %v1537
      %1558 = vmatprep.subr.bf16.mxu0 0
      %1559 = vmatpush1.bf16.msra.mxu0 %v1538
      %1560 = vmatprep.subr.bf16.mxu0 0
      %1561 = vmatpush1.bf16.msra.mxu0 %v1539
      %1562 = vmatprep.subr.bf16.mxu0 0
      %1563 = vmatpush1.bf16.msra.mxu0 %v1540
      %1564 = vmatprep.subr.bf16.mxu0 0
      %1565 = vmatpush1.bf16.msra.mxu0 %v1541
      %1566 = vmatprep.subr.bf16.mxu0 0
      %1567 = vmatpush1.bf16.msra.mxu0 0
      %1568 = vmatprep.subr.bf16.mxu0 0
      %1569 = vmatpush1.bf16.msra.mxu0 0
      %1570 = vmatprep.subr.bf16.mxu0 0
      %1571 = vmatpush1.bf16.msra.mxu0 0
      %1572 = vmatprep.subr.bf16.mxu0 0
      %1573 = vmatpush1.bf16.msra.mxu0 0
      %1574 = vmatprep.subr.bf16.mxu0 0
      %1575 = vmatpush1.bf16.msra.mxu0 0
      %1576 = vmatprep.subr.bf16.mxu0 0
      %1577 = vmatpush1.bf16.msra.mxu0 0
      %1578 = vmatprep.subr.bf16.mxu0 0
      %1579 = vmatpush1.bf16.msra.mxu0 0
      %1580 = vmatprep.subr.bf16.mxu0 0
      %1581 = vmatpush1.bf16.msra.mxu0 0
      %1582 = vmatprep.mubr.bf16.mxu0 0
      %1583 = vmatmul.mubr.bf16.gmra.mrb[0].mxu0 %v1478
      %v1584 = vpop.f32.mrb[0].mxu0
      %v1585 = vadd.f32 %v1500, %v1584
      %v1586 = vpop.f32.mrb[0].mxu0
      %v1587 = vpop.f32.mrb[0].mxu0
      %v1588 = vpop.f32.mrb[0].mxu0
      %1589 = vdwg.mxu0
      %v1590 = vmax.f32 %v1585, 0.0
      %v1591 = vpack.c.bf16 %v1590, %v1590
      %v1592 = vld [vmem:[%s6] sm:$0xf]
      %v1593 = vld [vmem:[%s6 + $0x4] sm:$0xf]
      %v1594 = vld [vmem:[%s6 + $0x8] sm:$0xf]
      %v1595 = vld [vmem:[%s6 + $0xc] sm:$0xf]
      %v1596 = vld [vmem:[%s6 + $0x10] sm:$0xf]
      %v1597 = vld [vmem:[%s6 + $0x14] sm:$0xf]
      %v1598 = vld [vmem:[%s6 + $0x18] sm:$0xf]
      %v1599 = vld [vmem:[%s6 + $0x1c] sm:$0xf]
      %v1600 = vld [vmem:[%s6 + $0x20] sm:$0xf]
      %v1601 = vld [vmem:[%s6 + $0x24] sm:$0xf]
      %v1602 = vld [vmem:[%s6 + $0x28] sm:$0xf]
      %v1603 = vld [vmem:[%s6 + $0x2c] sm:$0xf]
      %v1604 = vld [vmem:[%s6 + $0x30] sm:$0xf]
      %v1605 = vld [vmem:[%s6 + $0x34] sm:$0xf]
      %v1606 = vld [vmem:[%s6 + $0x38] sm:$0xf]
      %v1607 = vld [vmem:[%s6 + $0x3c] sm:$0xf]
      %v1608 = vld [vmem:[%s7] sm:$0x1]
      %v1610 = vlaneseq
      %v1611 = vshrl.u32 %v1610, 7
      %v1612 = vsub.s32 0, %v1611
      %v1613 = vrot.slane %v1608, %v1612
      %v1631 = vunpack.c.l.b16 %v1592
      %v1632 = vunpack.c.l.b16 %v1593
      %v1633 = vunpack.c.l.b16 %v1594
      %v1634 = vunpack.c.l.b16 %v1595
      %v1635 = vunpack.c.l.b16 %v1596
      %v1636 = vunpack.c.l.b16 %v1597
      %v1637 = vunpack.c.l.b16 %v1598
      %v1638 = vunpack.c.l.b16 %v1599
      %v1639 = vunpack.c.l.b16 %v1600
      %v1640 = vunpack.c.l.b16 %v1601
      %v1641 = vunpack.c.l.b16 %v1602
      %v1642 = vunpack.c.l.b16 %v1603
      %v1643 = vunpack.c.l.b16 %v1604
      %v1644 = vunpack.c.l.b16 %v1605
      %v1645 = vunpack.c.l.b16 %v1606
      %v1646 = vunpack.c.l.b16 %v1607
      %v1647 = vpack.c.b16 %v1632, %v1631
      %v1648 = vpack.c.b16 %v1634, %v1633
      %v1649 = vpack.c.b16 %v1636, %v1635
      %v1650 = vpack.c.b16 %v1638, %v1637
      %v1651 = vpack.c.b16 %v1640, %v1639
      %v1652 = vpack.c.b16 %v1642, %v1641
      %v1653 = vpack.c.b16 %v1644, %v1643
      %v1654 = vpack.c.b16 %v1646, %v1645
      %1663 = vmatprep.subr.bf16.mxu0 0
      %1664 = vmatpush1.bf16.msra.mxu0 %v1647
      %1665 = vmatprep.subr.bf16.mxu0 0
      %1666 = vmatpush1.bf16.msra.mxu0 %v1648
      %1667 = vmatprep.subr.bf16.mxu0 0
      %1668 = vmatpush1.bf16.msra.mxu0 %v1649
      %1669 = vmatprep.subr.bf16.mxu0 0
      %1670 = vmatpush1.bf16.msra.mxu0 %v1650
      %1671 = vmatprep.subr.bf16.mxu0 0
      %1672 = vmatpush1.bf16.msra.mxu0 %v1651
      %1673 = vmatprep.subr.bf16.mxu0 0
      %1674 = vmatpush1.bf16.msra.mxu0 %v1652
      %1675 = vmatprep.subr.bf16.mxu0 0
      %1676 = vmatpush1.bf16.msra.mxu0 %v1653
      %1677 = vmatprep.subr.bf16.mxu0 0
      %1678 = vmatpush1.bf16.msra.mxu0 %v1654
      %1679 = vmatprep.subr.bf16.mxu0 0
      %1680 = vmatpush1.bf16.msra.mxu0 0
      %1681 = vmatprep.subr.bf16.mxu0 0
      %1682 = vmatpush1.bf16.msra.mxu0 0
      %1683 = vmatprep.subr.bf16.mxu0 0
      %1684 = vmatpush1.bf16.msra.mxu0 0
      %1685 = vmatprep.subr.bf16.mxu0 0
      %1686 = vmatpush1.bf16.msra.mxu0 0
      %1687 = vmatprep.subr.bf16.mxu0 0
      %1688 = vmatpush1.bf16.msra.mxu0 0
      %1689 = vmatprep.subr.bf16.mxu0 0
      %1690 = vmatpush1.bf16.msra.mxu0 0
      %1691 = vmatprep.subr.bf16.mxu0 0
      %1692 = vmatpush1.bf16.msra.mxu0 0
      %1693 = vmatprep.subr.bf16.mxu0 0
      %1694 = vmatpush1.bf16.msra.mxu0 0
      %1695 = vmatprep.mubr.bf16.mxu0 0
      %1696 = vmatmul.mubr.bf16.gmra.mrb[0].mxu0 %v1591
      %v1697 = vpop.f32.mrb[0].mxu0
      %v1698 = vadd.f32 %v1613, %v1697
      %v1699 = vpop.f32.mrb[0].mxu0
      %v1700 = vpop.f32.mrb[0].mxu0
      %v1701 = vpop.f32.mrb[0].mxu0
      %1702 = vdwg.mxu0
      %1703 = vst [vmem:[%s8] sm:$0xff] %v1698
      %v1704 = vld [vmem:[#allocation3] sm:$0xff]
      %v1705 = vld [vmem:[%s3] sm:$0x1]
      %v1707 = vlaneseq
      %v1708 = vshrl.u32 %v1707, 7
      %v1709 = vsub.s32 0, %v1708
      %v1710 = vrot.slane %v1705, %v1709
      %v1712 = vadd.f32 %v1704, %v1710
      %v1713 = vpack.c.bf16 %v1712, %v1712
      %v1714 = vld [vmem:[#allocation4] sm:$0xf]
      %v1715 = vld [vmem:[#allocation4 + $0x4] sm:$0xf]
      %v1716 = vld [vmem:[#allocation4 + $0x8] sm:$0xf]
      %v1717 = vld [vmem:[#allocation4 + $0xc] sm:$0xf]
      %v1718 = vld [vmem:[#allocation4 + $0x10] sm:$0xf]
      %v1719 = vld [vmem:[#allocation4 + $0x14] sm:$0xf]
      %v1720 = vld [vmem:[#allocation4 + $0x18] sm:$0xf]
      %v1721 = vld [vmem:[#allocation4 + $0x1c] sm:$0xf]
      %v1722 = vld [vmem:[#allocation4 + $0x20] sm:$0xf]
      %v1723 = vld [vmem:[#allocation4 + $0x24] sm:$0xf]
      %v1724 = vld [vmem:[#allocation4 + $0x28] sm:$0xf]
      %v1725 = vld [vmem:[#allocation4 + $0x2c] sm:$0xf]
      %v1726 = vld [vmem:[#allocation4 + $0x30] sm:$0xf]
      %v1727 = vld [vmem:[#allocation4 + $0x34] sm:$0xf]
      %v1728 = vld [vmem:[#allocation4 + $0x38] sm:$0xf]
      %v1729 = vld [vmem:[#allocation4 + $0x3c] sm:$0xf]
      %v1730 = vld [vmem:[%s5] sm:$0x1]
      %v1732 = vlaneseq
      %v1733 = vshrl.u32 %v1732, 7
      %v1734 = vsub.s32 0, %v1733
      %v1735 = vrot.slane %v1730, %v1734
      %v1753 = vunpack.c.l.b16 %v1714
      %v1754 = vunpack.c.l.b16 %v1715
      %v1755 = vunpack.c.l.b16 %v1716
      %v1756 = vunpack.c.l.b16 %v1717
      %v1757 = vunpack.c.l.b16 %v1718
      %v1758 = vunpack.c.l.b16 %v1719
      %v1759 = vunpack.c.l.b16 %v1720
      %v1760 = vunpack.c.l.b16 %v1721
      %v1761 = vunpack.c.l.b16 %v1722
      %v1762 = vunpack.c.l.b16 %v1723
      %v1763 = vunpack.c.l.b16 %v1724
      %v1764 = vunpack.c.l.b16 %v1725
      %v1765 = vunpack.c.l.b16 %v1726
      %v1766 = vunpack.c.l.b16 %v1727
      %v1767 = vunpack.c.l.b16 %v1728
      %v1768 = vunpack.c.l.b16 %v1729
      %v1769 = vpack.c.b16 %v1754, %v1753
      %v1770 = vpack.c.b16 %v1756, %v1755
      %v1771 = vpack.c.b16 %v1758, %v1757
      %v1772 = vpack.c.b16 %v1760, %v1759
      %v1773 = vpack.c.b16 %v1762, %v1761
      %v1774 = vpack.c.b16 %v1764, %v1763
      %v1775 = vpack.c.b16 %v1766, %v1765
      %v1776 = vpack.c.b16 %v1768, %v1767
      %1785 = vmatprep.subr.bf16.mxu0 0
      %1786 = vmatpush1.bf16.msra.mxu0 %v1769
      %1787 = vmatprep.subr.bf16.mxu0 0
      %1788 = vmatpush1.bf16.msra.mxu0 %v1770
      %1789 = vmatprep.subr.bf16.mxu0 0
      %1790 = vmatpush1.bf16.msra.mxu0 %v1771
      %1791 = vmatprep.subr.bf16.mxu0 0
      %1792 = vmatpush1.bf16.msra.mxu0 %v1772
      %1793 = vmatprep.subr.bf16.mxu0 0
      %1794 = vmatpush1.bf16.msra.mxu0 %v1773
      %1795 = vmatprep.subr.bf16.mxu0 0
      %1796 = vmatpush1.bf16.msra.mxu0 %v1774
      %1797 = vmatprep.subr.bf16.mxu0 0
      %1798 = vmatpush1.bf16.msra.mxu0 %v1775
      %1799 = vmatprep.subr.bf16.mxu0 0
      %1800 = vmatpush1.bf16.msra.mxu0 %v1776
      %1801 = vmatprep.subr.bf16.mxu0 0
      %1802 = vmatpush1.bf16.msra.mxu0 0
      %1803 = vmatprep.subr.bf16.mxu0 0
      %1804 = vmatpush1.bf16.msra.mxu0 0
      %1805 = vmatprep.subr.bf16.mxu0 0
      %1806 = vmatpush1.bf16.msra.mxu0 0
      %1807 = vmatprep.subr.bf16.mxu0 0
      %1808 = vmatpush1.bf16.msra.mxu0 0
      %1809 = vmatprep.subr.bf16.mxu0 0
      %1810 = vmatpush1.bf16.msra.mxu0 0
      %1811 = vmatprep.subr.bf16.mxu0 0
      %1812 = vmatpush1.bf16.msra.mxu0 0
      %1813 = vmatprep.subr.bf16.mxu0 0
      %1814 = vmatpush1.bf16.msra.mxu0 0
      %1815 = vmatprep.subr.bf16.mxu0 0
      %1816 = vmatpush1.bf16.msra.mxu0 0
      %1817 = vmatprep.mubr.bf16.mxu0 0
      %1818 = vmatmul.mubr.bf16.gmra.mrb[0].mxu0 %v1713
      %v1819 = vpop.f32.mrb[0].mxu0
      %v1820 = vadd.f32 %v1735, %v1819
      %v1821 = vpop.f32.mrb[0].mxu0
      %v1822 = vpop.f32.mrb[0].mxu0
      %v1823 = vpop.f32.mrb[0].mxu0
      %1824 = vdwg.mxu0
      %v1825 = vmax.f32 %v1820, 0.0
      %v1826 = vpack.c.bf16 %v1825, %v1825
      %v1827 = vld [vmem:[%s6] sm:$0xf]
      %v1828 = vld [vmem:[%s6 + $0x4] sm:$0xf]
      %v1829 = vld [vmem:[%s6 + $0x8] sm:$0xf]
      %v1830 = vld [vmem:[%s6 + $0xc] sm:$0xf]
      %v1831 = vld [vmem:[%s6 + $0x10] sm:$0xf]
      %v1832 = vld [vmem:[%s6 + $0x14] sm:$0xf]
      %v1833 = vld [vmem:[%s6 + $0x18] sm:$0xf]
      %v1834 = vld [vmem:[%s6 + $0x1c] sm:$0xf]
      %v1835 = vld [vmem:[%s6 + $0x20] sm:$0xf]
      %v1836 = vld [vmem:[%s6 + $0x24] sm:$0xf]
      %v1837 = vld [vmem:[%s6 + $0x28] sm:$0xf]
      %v1838 = vld [vmem:[%s6 + $0x2c] sm:$0xf]
      %v1839 = vld [vmem:[%s6 + $0x30] sm:$0xf]
      %v1840 = vld [vmem:[%s6 + $0x34] sm:$0xf]
      %v1841 = vld [vmem:[%s6 + $0x38] sm:$0xf]
      %v1842 = vld [vmem:[%s6 + $0x3c] sm:$0xf]
      %v1843 = vld [vmem:[%s7] sm:$0x1]
      %v1845 = vlaneseq
      %v1846 = vshrl.u32 %v1845, 7
      %v1847 = vsub.s32 0, %v1846
      %v1848 = vrot.slane %v1843, %v1847
      %v1866 = vunpack.c.l.b16 %v1827
      %v1867 = vunpack.c.l.b16 %v1828
      %v1868 = vunpack.c.l.b16 %v1829
      %v1869 = vunpack.c.l.b16 %v1830
      %v1870 = vunpack.c.l.b16 %v1831
      %v1871 = vunpack.c.l.b16 %v1832
      %v1872 = vunpack.c.l.b16 %v1833
      %v1873 = vunpack.c.l.b16 %v1834
      %v1874 = vunpack.c.l.b16 %v1835
      %v1875 = vunpack.c.l.b16 %v1836
      %v1876 = vunpack.c.l.b16 %v1837
      %v1877 = vunpack.c.l.b16 %v1838
      %v1878 = vunpack.c.l.b16 %v1839
      %v1879 = vunpack.c.l.b16 %v1840
      %v1880 = vunpack.c.l.b16 %v1841
      %v1881 = vunpack.c.l.b16 %v1842
      %v1882 = vpack.c.b16 %v1867, %v1866
      %v1883 = vpack.c.b16 %v1869, %v1868
      %v1884 = vpack.c.b16 %v1871, %v1870
      %v1885 = vpack.c.b16 %v1873, %v1872
      %v1886 = vpack.c.b16 %v1875, %v1874
      %v1887 = vpack.c.b16 %v1877, %v1876
      %v1888 = vpack.c.b16 %v1879, %v1878
      %v1889 = vpack.c.b16 %v1881, %v1880
      %1898 = vmatprep.subr.bf16.mxu0 0
      %1899 = vmatpush1.bf16.msra.mxu0 %v1882
      %1900 = vmatprep.subr.bf16.mxu0 0
      %1901 = vmatpush1.bf16.msra.mxu0 %v1883
      %1902 = vmatprep.subr.bf16.mxu0 0
      %1903 = vmatpush1.bf16.msra.mxu0 %v1884
      %1904 = vmatprep.subr.bf16.mxu0 0
      %1905 = vmatpush1.bf16.msra.mxu0 %v1885
      %1906 = vmatprep.subr.bf16.mxu0 0
      %1907 = vmatpush1.bf16.msra.mxu0 %v1886
      %1908 = vmatprep.subr.bf16.mxu0 0
      %1909 = vmatpush1.bf16.msra.mxu0 %v1887
      %1910 = vmatprep.subr.bf16.mxu0 0
      %1911 = vmatpush1.bf16.msra.mxu0 %v1888
      %1912 = vmatprep.subr.bf16.mxu0 0
      %1913 = vmatpush1.bf16.msra.mxu0 %v1889
      %1914 = vmatprep.subr.bf16.mxu0 0
      %1915 = vmatpush1.bf16.msra.mxu0 0
      %1916 = vmatprep.subr.bf16.mxu0 0
      %1917 = vmatpush1.bf16.msra.mxu0 0
      %1918 = vmatprep.subr.bf16.mxu0 0
      %1919 = vmatpush1.bf16.msra.mxu0 0
      %1920 = vmatprep.subr.bf16.mxu0 0
      %1921 = vmatpush1.bf16.msra.mxu0 0
      %1922 = vmatprep.subr.bf16.mxu0 0
      %1923 = vmatpush1.bf16.msra.mxu0 0
      %1924 = vmatprep.subr.bf16.mxu0 0
      %1925 = vmatpush1.bf16.msra.mxu0 0
      %1926 = vmatprep.subr.bf16.mxu0 0
      %1927 = vmatpush1.bf16.msra.mxu0 0
      %1928 = vmatprep.subr.bf16.mxu0 0
      %1929 = vmatpush1.bf16.msra.mxu0 0
      %1930 = vmatprep.mubr.bf16.mxu0 0
      %1931 = vmatmul.mubr.bf16.gmra.mrb[0].mxu0 %v1826
      %v1932 = vpop.f32.mrb[0].mxu0
      %v1933 = vadd.f32 %v1848, %v1932
      %v1934 = vpop.f32.mrb[0].mxu0
      %v1935 = vpop.f32.mrb[0].mxu0
      %v1936 = vpop.f32.mrb[0].mxu0
      %1937 = vdwg.mxu0
      %1938 = vst [vmem:[%s9] sm:$0xff] %v1933
    $region45: #{_lambda_.2} parent=1 // pred_fallthru
      _
    // Predicated region
    $region46: #{_lambda_.2} parent=1 // pred_check
      _
    $region47: #{_lambda_.2} parent=1 // pred_check_branch
      %1940 = sbr.rel (0) target = $region49
    $region48: #{_lambda_.2} parent=1 // pred_region
      _
    $region49: #{_lambda_.2} parent=1 // pred_fallthru
      _
    // Predicated region
    $region50: #{_lambda_.2} parent=1 // pred_check
      _
    $region51: #{_lambda_.2} parent=1 // pred_check_branch
      %1942 = sbr.rel (0) target = $region53
    $region52: #{_lambda_.2} parent=1 // pred_region
      _
    $region53: #{_lambda_.2} parent=1 // pred_fallthru
      _
    // Predicated region
    $region54: #{_lambda_.2} parent=1 // pred_check
      _
    $region55: #{_lambda_.2} parent=1 // pred_check_branch
      %1944 = sbr.rel (0) target = $region57
    $region56: #{_lambda_.2} parent=1 // pred_region
      _
    $region57: #{_lambda_.2} parent=1 // pred_fallthru
      _
    // Predicated region
    $region58: #{_lambda_.2} parent=1 // pred_check
      _
    $region59: #{_lambda_.2} parent=1 // pred_check_branch
      %1946 = sbr.rel (0) target = $region61
    $region60: #{_lambda_.2} parent=1 // pred_region
      _
    $region61: #{_lambda_.2} parent=1 // pred_fallthru
      _
    %1947 = vsyncpa [#allocation5], 1

</llo_original>
